<compile_context>
chip_gen: v7x
topology: tpu7x:2x2x1
jax: 0.10.0
libtpu: 0.0.40
codegen_flags: <defaults>
</compile_context>

<pallas_src>
import math
import functools

import numpy as np
import jax
import jax.numpy as jnp
from jax import lax
from jax.experimental import pallas as pl
from jax.experimental.pallas import tpu as pltpu


SEQ_TILE_TARGET = 128     # q / kv tile length for flash attention (tq == tk)
VOCAB_TILE_TARGET = 4096  # lm-head vocab tile (lane-dense, amortizes step overhead)


@functools.lru_cache(maxsize=None)
def _vmem_budget_and_row_tile():
    """Pick the VMEM budget / row tile for the local TPU generation."""
    cap = None
    try:
        cap = pltpu.get_tpu_info().vmem_capacity_bytes
    except Exception:
        cap = None
    if cap is not None and cap >= 100 * 1024 * 1024:
        # v5e / v6e: 128 MiB physical VMEM -> bigger row tiles, bigger budget.
        return 96 * 1024 * 1024, 512
    # v7x (64 MiB physical) or unknown: conservative budget.
    return 48 * 1024 * 1024, 256


def _pick_tile(n, target):
    """Largest tile <= target that divides n (16-row aligned for bf16 blocks)."""
    if n <= target:
        return n
    for t in range(min(target, n), 0, -1):
        if n % t == 0 and t % 16 == 0:
            return t
    return n


# ---------------------------------------------------------------------------
# In-kernel math helpers (pure jnp, traced into the Pallas kernels)
# ---------------------------------------------------------------------------
def _erf(x):
    # Abramowitz & Stegun 7.1.26 rational approximation (|err| < 1.5e-7).
    # TODO(synk): use lax.erf directly if/when erf has a guaranteed Mosaic lowering.
    p = 0.3275911
    a1, a2, a3, a4, a5 = 0.254829592, -0.284496736, 1.421413741, -1.453152027, 1.061405429
    s = jnp.where(x >= 0.0, 1.0, -1.0)
    z = jnp.abs(x)
    t = 1.0 / (1.0 + p * z)
    poly = ((((a5 * t + a4) * t + a3) * t + a2) * t + a1) * t
    return s * (1.0 - poly * jnp.exp(-z * z))


def _gelu_exact(x):
    # matches torch.nn.GELU() (erf-based, approximate='none'); kept in f32
    return 0.5 * x * (1.0 + _erf(x * (1.0 / math.sqrt(2.0))))


def _layernorm(x, w, b, eps=1e-5):
    mean = jnp.mean(x, axis=-1, keepdims=True)
    xc = x - mean
    var = jnp.mean(xc * xc, axis=-1, keepdims=True)
    return xc * lax.rsqrt(var + eps) * w + b


# ---------------------------------------------------------------------------
# Pallas kernels
# ---------------------------------------------------------------------------
def ln_qkv_kernel(x_ref, ln_w, ln_b, w_qkv, b_qkv, qkv_ref):
    """Row tile: LN1 followed by fused QKV projection (bf16 MXU, f32 acc).

    Output is written in bf16: it is only ever consumed as an MXU operand."""
    h = _layernorm(x_ref[...], ln_w[...], ln_b[...])
    y = jnp.dot(h.astype(jnp.bfloat16), w_qkv[...],
                preferred_element_type=jnp.float32) + b_qkv[...]
    qkv_ref[...] = y.astype(jnp.bfloat16)


def make_flash_attn_kernel(tk):
    """Causal flash attention with the kv loop INSIDE the kernel.

    grid = (B*H, T//tq); q is already scaled by 1/sqrt(Dh) (folded into w_qkv).
    Exactly qi interior kv tiles (fully visible, no mask work) then one
    diagonal tile with the triangular mask.  Requires tq == tk."""

    def kernel(q_ref, k_ref, v_ref, o_ref):
        qi = pl.program_id(1)
        tq = q_ref.shape[1]
        dh = q_ref.shape[2]
        q = q_ref[0]                                   # (tq, Dh) bf16, pre-scaled

        def attend(kv_start, m, l, acc, mask=None):
            k = k_ref[0, pl.ds(kv_start, tk), :]       # (tk, Dh) bf16
            v = v_ref[0, pl.ds(kv_start, tk), :]
            s = lax.dot_general(q, k, (((1,), (1,)), ((), ())),
                                preferred_element_type=jnp.float32)
            if mask is not None:
                s = jnp.where(mask, s, -1e30)          # finite mask: no -inf NaNs
            m_new = jnp.maximum(m, s.max(axis=-1, keepdims=True))
            alpha = jnp.exp(m - m_new)
            p = jnp.exp(s - m_new)
            l_new = alpha * l + p.sum(axis=-1, keepdims=True)
            acc_new = alpha * acc + lax.dot_general(
                p.astype(jnp.bfloat16), v, (((1,), (0,)), ((), ())),
                preferred_element_type=jnp.float32)
            return m_new, l_new, acc_new

        def interior(ki, carry):
            m, l, acc = carry
            return attend(pl.multiple_of(ki * tk, tk), m, l, acc)

        m0 = jnp.full((tq, 1), -1e30, jnp.float32)     # finite sentinel: no -inf NaNs
        l0 = jnp.zeros((tq, 1), jnp.float32)
        a0 = jnp.zeros((tq, dh), jnp.float32)
        # interior kv tiles (ki < qi): fully visible under the causal mask.
        m, l, acc = lax.fori_loop(0, qi, interior, (m0, l0, a0))

        # diagonal tile (ki == qi): triangular mask within the tile only.
        row = lax.broadcasted_iota(jnp.int32, (tq, tk), 0)
        col = lax.broadcasted_iota(jnp.int32, (tq, tk), 1)
        m, l, acc = attend(pl.multiple_of(qi * tk, tk), m, l, acc, mask=row >= col)

        o_ref[0] = (acc * pl.reciprocal(l, approx=True)).astype(o_ref.dtype)

    return kernel


def proj_mlp_kernel(y_ref, x_ref, w_proj, b_proj, ln2_w, ln2_b,
                    w_fc, b_fc, w_fc2, b_fc2, out_ref):
    """Row tile: attn out-proj + residual, then LN2 + GELU MLP + residual."""
    x = x_ref[...]                                     # f32 residual stream
    att = jnp.dot(y_ref[...], w_proj[...],             # y already bf16
                  preferred_element_type=jnp.float32) + b_proj[...]
    x = x + att                                        # residual (dropout p=0.0)
    h = _layernorm(x, ln2_w[...], ln2_b[...])
    h = jnp.dot(h.astype(jnp.bfloat16), w_fc[...],
                preferred_element_type=jnp.float32) + b_fc[...]
    h = _gelu_exact(h)                                 # f32 elementwise (v5e VPU has no bf16)
    h = jnp.dot(h.astype(jnp.bfloat16), w_fc2[...],
                preferred_element_type=jnp.float32) + b_fc2[...]
    out_ref[...] = x + h                               # residual (dropout p=0.0)


def lnf_head_kernel(x_last_ref, lnf_w, lnf_b, wte_ref, out_ref):
    """Vocab tile: ln_f + tied lm_head on the last position, contracting on C."""
    h = _layernorm(x_last_ref[...], lnf_w[...], lnf_b[...])
    out_ref[...] = lax.dot_general(
        h.astype(jnp.bfloat16), wte_ref[...], (((1,), (1,)), ((), ())),
        preferred_element_type=jnp.float32)


# ---------------------------------------------------------------------------
# Parameter init (matches GPT._init_weights: normal(0, 0.02) / zeros / ones)
# ---------------------------------------------------------------------------
def init_params(key, *, vocab_size, block_size, n_layer, n_embd):
    std = 0.02
    keys = iter(jax.random.split(key, 2 + 4 * n_layer))

    def normal(shape):
        return std * jax.random.normal(next(keys), shape, jnp.float32)

    params = {
        'wte': normal((vocab_size, n_embd)),
        'wpe': normal((block_size, n_embd)),
        'lnf_w': jnp.ones((1, n_embd), jnp.float32),
        'lnf_b': jnp.zeros((1, n_embd), jnp.float32),
        'blocks': [],
    }
    for _ in range(n_layer):
        params['blocks'].append({
            'ln1_w': jnp.ones((1, n_embd), jnp.float32),
            'ln1_b': jnp.zeros((1, n_embd), jnp.float32),
            'w_qkv': normal((n_embd, 3 * n_embd)),
            'b_qkv': jnp.zeros((1, 3 * n_embd), jnp.float32),
            'w_proj': normal((n_embd, n_embd)),
            'b_proj': jnp.zeros((1, n_embd), jnp.float32),
            'ln2_w': jnp.ones((1, n_embd), jnp.float32),
            'ln2_b': jnp.zeros((1, n_embd), jnp.float32),
            'w_fc': normal((n_embd, 4 * n_embd)),
            'b_fc': jnp.zeros((1, 4 * n_embd), jnp.float32),
            'w_fc2': normal((4 * n_embd, n_embd)),
            'b_fc2': jnp.zeros((1, n_embd), jnp.float32),
        })
    return params


# ---------------------------------------------------------------------------
# One-time inference weight prep:
#   * bf16 weight copies made ONCE (no per-forward f32->bf16 casts),
#   * 1/sqrt(Dh) folded into the Q slice of w_qkv / b_qkv,
#   * tied lm-head wte copy padded to a lane-friendly vocab multiple (bf16).
# ---------------------------------------------------------------------------
def prepare_params(params, n_head):
    V, C = params['wte'].shape
    Dh = C // n_head
    scale = 1.0 / math.sqrt(Dh)
    qscale = jnp.concatenate([jnp.full((C,), scale, jnp.float32),
                              jnp.ones((2 * C,), jnp.float32)])

    Vp = ((V + 127) // 128) * 128
    wte_head = params['wte']
    if Vp != V:
        wte_head = jnp.pad(wte_head, ((0, Vp - V), (0, 0)))

    prep = {
        'wte': params['wte'],                       # f32: embedding gather
        'wpe': params['wpe'],
        'lnf_w': params['lnf_w'],
        'lnf_b': params['lnf_b'],
        'wte_head': wte_head.astype(jnp.bfloat16),  # (Vp, C) bf16, no HBM transpose
        'blocks': [],
    }
    for lp in params['blocks']:
        prep['blocks'].append({
            'ln1_w': lp['ln1_w'], 'ln1_b': lp['ln1_b'],
            'w_qkv': (lp['w_qkv'] * qscale[None, :]).astype(jnp.bfloat16),
            'b_qkv': lp['b_qkv'] * qscale[None, :],
            'w_proj': lp['w_proj'].astype(jnp.bfloat16),
            'b_proj': lp['b_proj'],
            'ln2_w': lp['ln2_w'], 'ln2_b': lp['ln2_b'],
            'w_fc': lp['w_fc'].astype(jnp.bfloat16),
            'b_fc': lp['b_fc'],
            'w_fc2': lp['w_fc2'].astype(jnp.bfloat16),
            'b_fc2': lp['b_fc2'],
        })
    return prep


# ---------------------------------------------------------------------------
# Forward pass (targets=None, return_logprob=False path) -> (logits(B,1,V), None)
# ---------------------------------------------------------------------------
def gpt_forward(idx, prep, n_head, seq_tile=None):
    B, T = idx.shape
    V, C = prep['wte'].shape
    Vp = prep['wte_head'].shape[0]
    H = n_head
    Dh = C // H
    R = B * T

    vmem_limit, row_tile_target = _vmem_budget_and_row_tile()

    # embeddings + (dropout p=0.0 -> identity): plain-JAX glue (gathers)
    tok_emb = jnp.take(prep['wte'], idx, axis=0)             # (B, T, C)
    pos_emb = prep['wpe'][:T][None, :, :]                    # (1, T, C)
    x = (tok_emb + pos_emb).astype(jnp.float32).reshape(R, C)

    tr = _pick_tile(R, row_tile_target)
    tq = seq_tile if seq_tile is not None else _pick_tile(T, SEQ_TILE_TARGET)
    tk = tq                                                  # kernel requires tq == tk
    assert T % tq == 0
    tv = _pick_tile(Vp, VOCAB_TILE_TARGET)

    row_params = pltpu.CompilerParams(
        dimension_semantics=("parallel",), vmem_limit_bytes=vmem_limit)
    attn_params = pltpu.CompilerParams(
        dimension_semantics=("parallel", "parallel"), vmem_limit_bytes=vmem_limit)
    head_params = pltpu.CompilerParams(
        dimension_semantics=("parallel",), vmem_limit_bytes=vmem_limit)

    def row_spec(width):
        return pl.BlockSpec((tr, width), lambda i: (i, 0))

    def bcast_spec(r, c):          # whole-array block, resident across the row grid
        # TODO(synk): single-buffer these resident weights (pl.Buffered(1)) or tile
        # w_fc/w_fc2 over the 4C axis for very large n_embd on v7x (64 MiB VMEM).
        return pl.BlockSpec((r, c), lambda i: (0, 0))

    flash_kernel = make_flash_attn_kernel(tk)
    direct_heads = (Dh % 128 == 0)    # (8,128)-rule: only then can BlockSpecs slice heads

    # TODO(synk): stack per-layer weights into (n_layer, ...) arrays and make the
    # layer index a grid axis (or use cross-call semaphore futures) so layer l+1
    # weights stream in while layer l computes.
    for lp in prep['blocks']:
        # --- LN1 + fused QKV projection, row-tiled, bf16 output ---
        qkv = pl.pallas_call(
            ln_qkv_kernel,
            out_shape=jax.ShapeDtypeStruct((R, 3 * C), jnp.bfloat16),
            grid=(R // tr,),
            in_specs=[row_spec(C), bcast_spec(1, C), bcast_spec(1, C),
                      bcast_spec(C, 3 * C), bcast_spec(1, 3 * C)],
            out_specs=row_spec(3 * C),
            compiler_params=row_params,
        )(x, lp['ln1_w'], lp['ln1_b'], lp['w_qkv'], lp['b_qkv'])

        if direct_heads:
            # No head split/merge transposes: index q/k/v straight out of the fused
            # (B, T, 3C) tensor and write y straight into (B, T, C) via BlockSpecs.
            qkv3 = qkv.reshape(B, T, 3 * C)
            y = pl.pallas_call(
                flash_kernel,
                out_shape=jax.ShapeDtypeStruct((B, T, C), jnp.bfloat16),
                grid=(B * H, T // tq),
                in_specs=[
                    pl.BlockSpec((1, tq, Dh), lambda bh, qi: (bh // H, qi, bh % H)),
                    pl.BlockSpec((1, T, Dh), lambda bh, qi: (bh // H, 0, H + bh % H)),
                    pl.BlockSpec((1, T, Dh), lambda bh, qi: (bh // H, 0, 2 * H + bh % H)),
                ],
                out_specs=pl.BlockSpec((1, tq, Dh),
                                       lambda bh, qi: (bh // H, qi, bh % H)),
                compiler_params=attn_params,
            )(qkv3, qkv3, qkv3)
            y2 = y.reshape(R, C)
        else:
            # Dh < 128: (8,128) rule blocks direct head slicing -> keep the
            # split/merge transposes, but on bf16 data (half the HBM bytes).
            qkv5 = qkv.reshape(B, T, 3, H, Dh)
            q = jnp.transpose(qkv5[:, :, 0], (0, 2, 1, 3)).reshape(B * H, T, Dh)
            k = jnp.transpose(qkv5[:, :, 1], (0, 2, 1, 3)).reshape(B * H, T, Dh)
            v = jnp.transpose(qkv5[:, :, 2], (0, 2, 1, 3)).reshape(B * H, T, Dh)
            y = pl.pallas_call(
                flash_kernel,
                out_shape=jax.ShapeDtypeStruct((B * H, T, Dh), jnp.bfloat16),
                grid=(B * H, T // tq),
                in_specs=[pl.BlockSpec((1, tq, Dh), lambda bh, qi: (bh, qi, 0)),
                          pl.BlockSpec((1, T, Dh), lambda bh, qi: (bh, 0, 0)),
                          pl.BlockSpec((1, T, Dh), lambda bh, qi: (bh, 0, 0))],
                out_specs=pl.BlockSpec((1, tq, Dh), lambda bh, qi: (bh, qi, 0)),
                compiler_params=attn_params,
            )(q, k, v)
            y2 = jnp.transpose(y.reshape(B, H, T, Dh), (0, 2, 1, 3)).reshape(R, C)

        # --- out-proj + residual + LN2 + GELU MLP + residual, row-tiled ---
        x = pl.pallas_call(
            proj_mlp_kernel,
            out_shape=jax.ShapeDtypeStruct((R, C), jnp.float32),
            grid=(R // tr,),
            in_specs=[row_spec(C), row_spec(C),
                      bcast_spec(C, C), bcast_spec(1, C),
                      bcast_spec(1, C), bcast_spec(1, C),
                      bcast_spec(C, 4 * C), bcast_spec(1, 4 * C),
                      bcast_spec(4 * C, C), bcast_spec(1, C)],
            out_specs=row_spec(C),
            compiler_params=row_params,
        )(y2, x, lp['w_proj'], lp['b_proj'], lp['ln2_w'], lp['ln2_b'],
          lp['w_fc'], lp['b_fc'], lp['w_fc2'], lp['b_fc2'])

    # --- ln_f + tied lm_head on the last position only, vocab-tiled ---
    x_last = x.reshape(B, T, C)[:, -1, :]                    # (B, C) glue slice
    logits_pad = pl.pallas_call(
        lnf_head_kernel,
        out_shape=jax.ShapeDtypeStruct((B, Vp), jnp.float32),
        grid=(Vp // tv,),
        in_specs=[pl.BlockSpec((B, C), lambda vi: (0, 0)),
                  pl.BlockSpec((1, C), lambda vi: (0, 0)),
                  pl.BlockSpec((1, C), lambda vi: (0, 0)),
                  pl.BlockSpec((tv, C), lambda vi: (vi, 0))],
        out_specs=pl.BlockSpec((B, tv), lambda vi: (0, vi)),
        compiler_params=head_params,
    )(x_last, prep['lnf_w'], prep['lnf_b'], prep['wte_head'])

    logits_last = logits_pad[:, :V]
    return logits_last[:, None, :], None                     # (B, 1, V), loss=None


# ---------------------------------------------------------------------------
# Pure-JAX reference (mirrors the PyTorch forward, with the same bf16 MXU
# operand casts as the kernels) for a numerical sanity check
# ---------------------------------------------------------------------------
def ref_forward(idx, params, n_head):
    B, T = idx.shape
    V, C = params['wte'].shape
    Dh = C // n_head

    def ln(x, w, b):
        m = x.mean(-1, keepdims=True)
        v = ((x - m) ** 2).mean(-1, keepdims=True)
        return (x - m) / jnp.sqrt(v + 1e-5) * w[0] + b[0]

    def mm(a, b):
        return jnp.dot(a.astype(jnp.bfloat16), b.astype(jnp.bfloat16),
                       preferred_element_type=jnp.float32)

    x = (jnp.take(params['wte'], idx, axis=0) + params['wpe'][:T][None]).astype(jnp.float32)
    mask = jnp.tril(jnp.ones((T, T), bool))
    for lp in params['blocks']:
        h = ln(x, lp['ln1_w'], lp['ln1_b'])
        qkv = mm(h.reshape(B * T, C), lp['w_qkv']).reshape(B, T, 3 * C) + lp['b_qkv'][0]
        q, k, v = jnp.split(qkv, 3, axis=-1)
        q = q.reshape(B, T, n_head, Dh).transpose(0, 2, 1, 3)
        k = k.reshape(B, T, n_head, Dh).transpose(0, 2, 1, 3)
        v = v.reshape(B, T, n_head, Dh).transpose(0, 2, 1, 3)
        att = jnp.einsum('bhtd,bhsd->bhts', q.astype(jnp.bfloat16), k.astype(jnp.bfloat16),
                         preferred_element_type=jnp.float32) / math.sqrt(Dh)
        att = jnp.where(mask[None, None], att, -1e30)
        att = jax.nn.softmax(att, axis=-1)
        y = jnp.einsum('bhts,bhsd->bhtd', att.astype(jnp.bfloat16), v.astype(jnp.bfloat16),
                       preferred_element_type=jnp.float32)
        y = y.transpose(0, 2, 1, 3).reshape(B, T, C)
        x = x + mm(y.reshape(B * T, C), lp['w_proj']).reshape(B, T, C) + lp['b_proj'][0]
        h = ln(x, lp['ln2_w'], lp['ln2_b'])
        h = jax.nn.gelu(mm(h.reshape(B * T, C), lp['w_fc']).reshape(B, T, 4 * C)
                        + lp['b_fc'][0], approximate=False)
        x = x + mm(h.reshape(B * T, 4 * C), lp['w_fc2']).reshape(B, T, C) + lp['b_fc2'][0]
    xl = ln(x[:, -1, :], params['lnf_w'], params['lnf_b'])
    return mm(xl, params['wte'].T)[:, None, :]


if __name__ == "__main__":
    root_key = jax.random.PRNGKey(0)

    def run_case(case_idx, *, vocab_size, block_size, n_layer, n_head, n_embd,
                 B, T, seq_tile):
        key = jax.random.fold_in(root_key, case_idx)
        k_params, k_idx = jax.random.split(key)
        params = init_params(k_params, vocab_size=vocab_size, block_size=block_size,
                             n_layer=n_layer, n_embd=n_embd)
        prep = prepare_params(params, n_head)
        idx = jax.random.randint(k_idx, (B, T), 0, vocab_size, dtype=jnp.int32)

        fwd = jax.jit(functools.partial(gpt_forward, n_head=n_head, seq_tile=seq_tile))
        logits, loss = fwd(idx, prep)
        logits = jax.block_until_ready(logits)
        assert logits.shape == (B, 1, vocab_size) and loss is None

        ref = jax.block_until_ready(ref_forward(idx, params, n_head))
        # bf16 MXU operands (f32 accumulation) + flash-softmax reordering + approx
        # reciprocal -> slightly looser tolerance than a pure-f32 version.
        np.testing.assert_allclose(np.asarray(logits), np.asarray(ref),
                                   rtol=2e-2, atol=2e-2)

    # 1) small GPT config consistent with the module: vocab=64, block_size=8,
    #    n_layer=2, n_head=4, n_embd=32 (Dh=8 -> transpose head path)
    run_case(0, vocab_size=64, block_size=8, n_layer=2, n_head=4, n_embd=32,
             B=2, T=8, seq_tile=None)

    # 2) config exercising the no-transpose head path (Dh=128) and the in-kernel
    #    causal kv loop over multiple tiles (T//tq = 2)
    run_case(1, vocab_size=128, block_size=32, n_layer=1, n_head=4, n_embd=512,
             B=2, T=32, seq_tile=16)

    print("KERNEL_OK")
</pallas_src>

<mosaic_0001>
module attributes {stable_mosaic.version = 11 : i64} {
  func.func @ln_qkv_kernel(%arg0: i32, %arg1: memref<16x32xf32, #tpu.memory_space<vmem>>, %arg2: memref<1x32xf32, #tpu.memory_space<vmem>>, %arg3: memref<1x32xf32, #tpu.memory_space<vmem>>, %arg4: memref<32x96xbf16, #tpu.memory_space<vmem>>, %arg5: memref<1x96xf32, #tpu.memory_space<vmem>>, %arg6: memref<16x96xbf16, #tpu.memory_space<vmem>>) attributes {dimension_semantics = [#tpu.dimension_semantics<parallel>], iteration_bounds = array<i64: 1>, scalar_prefetch = 0 : i64, scratch_operands = 0 : i64, tpu.core_type = #tpu.core_type<tc>, window_params = [{transform_indices = @transform_0, window_bounds = array<i64: 16, 32>}, {pipeline_mode = #tpu.pipeline_mode<synchronous>, transform_indices = @transform_1, window_bounds = array<i64: 1, 32>}, {pipeline_mode = #tpu.pipeline_mode<synchronous>, transform_indices = @transform_2, window_bounds = array<i64: 1, 32>}, {pipeline_mode = #tpu.pipeline_mode<synchronous>, transform_indices = @transform_3, window_bounds = array<i64: 32, 96>}, {pipeline_mode = #tpu.pipeline_mode<synchronous>, transform_indices = @transform_4, window_bounds = array<i64: 1, 96>}, {transform_indices = @transform_5, window_bounds = array<i64: 16, 96>}]} {
    %c0 = arith.constant 0 : index
    %c0_0 = arith.constant 0 : index
    %0 = vector.load %arg1[%c0, %c0_0] : memref<16x32xf32, #tpu.memory_space<vmem>>, vector<16x32xf32>
    %c0_1 = arith.constant 0 : index
    %c0_2 = arith.constant 0 : index
    %1 = vector.load %arg2[%c0_1, %c0_2] : memref<1x32xf32, #tpu.memory_space<vmem>>, vector<1x32xf32>
    %c0_3 = arith.constant 0 : index
    %c0_4 = arith.constant 0 : index
    %2 = vector.load %arg3[%c0_3, %c0_4] : memref<1x32xf32, #tpu.memory_space<vmem>>, vector<1x32xf32>
    %cst = arith.constant dense<0.000000e+00> : vector<16xf32>
    %3 = vector.multi_reduction <add>, %0, %cst [1] : vector<16x32xf32> to vector<16xf32>
    %4 = vector.shape_cast %3 : vector<16xf32> to vector<16x1xf32>
    %cst_5 = arith.constant 3.200000e+01 : f32
    %5 = vector.broadcast %cst_5 : f32 to vector<16x1xf32>
    %6 = arith.divf %4, %5 : vector<16x1xf32>
    %7 = vector.broadcast %6 : vector<16x1xf32> to vector<16x32xf32>
    %8 = arith.subf %0, %7 : vector<16x32xf32>
    %9 = arith.mulf %8, %8 : vector<16x32xf32>
    %cst_6 = arith.constant dense<0.000000e+00> : vector<16xf32>
    %10 = vector.multi_reduction <add>, %9, %cst_6 [1] : vector<16x32xf32> to vector<16xf32>
    %11 = vector.shape_cast %10 : vector<16xf32> to vector<16x1xf32>
    %cst_7 = arith.constant 3.200000e+01 : f32
    %12 = vector.broadcast %cst_7 : f32 to vector<16x1xf32>
    %13 = arith.divf %11, %12 : vector<16x1xf32>
    %cst_8 = arith.constant 9.99999974E-6 : f32
    %14 = vector.broadcast %cst_8 : f32 to vector<16x1xf32>
    %15 = arith.addf %13, %14 : vector<16x1xf32>
    %16 = math.rsqrt %15 : vector<16x1xf32>
    %17 = vector.broadcast %16 : vector<16x1xf32> to vector<16x32xf32>
    %18 = arith.mulf %8, %17 : vector<16x32xf32>
    %19 = vector.broadcast %1 : vector<1x32xf32> to vector<16x32xf32>
    %20 = arith.mulf %18, %19 : vector<16x32xf32>
    %21 = vector.broadcast %2 : vector<1x32xf32> to vector<16x32xf32>
    %22 = arith.addf %20, %21 : vector<16x32xf32>
    %23 = arith.truncf %22 : vector<16x32xf32> to vector<16x32xbf16>
    %c0_9 = arith.constant 0 : index
    %c0_10 = arith.constant 0 : index
    %24 = vector.load %arg4[%c0_9, %c0_10] : memref<32x96xbf16, #tpu.memory_space<vmem>>, vector<32x96xbf16>
    %cst_11 = arith.constant dense<0.000000e+00> : vector<16x96xf32>
    %25 = tpu.matmul %23, %24, %cst_11 {dimension_numbers = #tpu.dot_dimension_numbers<[1], [0], [0], [1], [0, 0, 1, 1], [], []>} : vector<16x32xbf16>, vector<32x96xbf16>, vector<16x96xf32> -> vector<16x96xf32>
    %c0_12 = arith.constant 0 : index
    %c0_13 = arith.constant 0 : index
    %26 = vector.load %arg5[%c0_12, %c0_13] : memref<1x96xf32, #tpu.memory_space<vmem>>, vector<1x96xf32>
    %27 = vector.broadcast %26 : vector<1x96xf32> to vector<16x96xf32>
    %28 = arith.addf %25, %27 : vector<16x96xf32>
    %29 = arith.truncf %28 : vector<16x96xf32> to vector<16x96xbf16>
    %c0_14 = arith.constant 0 : index
    %c0_15 = arith.constant 0 : index
    %30 = vector.load %arg6[%c0_14, %c0_15] : memref<16x96xbf16, #tpu.memory_space<vmem>>, vector<16x96xbf16>
    tpu.vector_store %arg6[%c0_14, %c0_15], %29 {strides = array<i32>} : memref<16x96xbf16, #tpu.memory_space<vmem>>, vector<16x96xbf16>,
    return
  }
  func.func @transform_0(%arg0: i32) -> (i32, i32) {
    %c0_i32 = arith.constant 0 : i32
    %c0_i32_0 = arith.constant 0 : i32
    return %arg0, %c0_i32 : i32, i32
  }
  func.func @transform_1(%arg0: i32) -> (i32, i32) {
    %c0_i32 = arith.constant 0 : i32
    %c0_i32_0 = arith.constant 0 : i32
    %c0_i32_1 = arith.constant 0 : i32
    return %c0_i32, %c0_i32_0 : i32, i32
  }
  func.func @transform_2(%arg0: i32) -> (i32, i32) {
    %c0_i32 = arith.constant 0 : i32
    %c0_i32_0 = arith.constant 0 : i32
    %c0_i32_1 = arith.constant 0 : i32
    return %c0_i32, %c0_i32_0 : i32, i32
  }
  func.func @transform_3(%arg0: i32) -> (i32, i32) {
    %c0_i32 = arith.constant 0 : i32
    %c0_i32_0 = arith.constant 0 : i32
    %c0_i32_1 = arith.constant 0 : i32
    return %c0_i32, %c0_i32_0 : i32, i32
  }
  func.func @transform_4(%arg0: i32) -> (i32, i32) {
    %c0_i32 = arith.constant 0 : i32
    %c0_i32_0 = arith.constant 0 : i32
    %c0_i32_1 = arith.constant 0 : i32
    return %c0_i32, %c0_i32_0 : i32, i32
  }
  func.func @transform_5(%arg0: i32) -> (i32, i32) {
    %c0_i32 = arith.constant 0 : i32
    %c0_i32_0 = arith.constant 0 : i32
    return %arg0, %c0_i32 : i32, i32
  }
}

module attributes {stable_mosaic.version = 11 : i64} {
  func.func @kernel(%arg0: i32, %arg1: i32, %arg2: memref<1x8x8xbf16, #tpu.memory_space<vmem>>, %arg3: memref<1x8x8xbf16, #tpu.memory_space<vmem>>, %arg4: memref<1x8x8xbf16, #tpu.memory_space<vmem>>, %arg5: memref<1x8x8xbf16, #tpu.memory_space<vmem>>) attributes {dimension_semantics = [#tpu.dimension_semantics<parallel>, #tpu.dimension_semantics<parallel>], iteration_bounds = array<i64: 8, 1>, scalar_prefetch = 0 : i64, scratch_operands = 0 : i64, tpu.core_type = #tpu.core_type<tc>, window_params = [{transform_indices = @transform_0, window_bounds = array<i64: 1, 8, 8>}, {transform_indices = @transform_1, window_bounds = array<i64: 1, 8, 8>}, {transform_indices = @transform_2, window_bounds = array<i64: 1, 8, 8>}, {transform_indices = @transform_3, window_bounds = array<i64: 1, 8, 8>}]} {
    %c0 = arith.constant 0 : index
    %c0_0 = arith.constant 0 : index
    %c0_1 = arith.constant 0 : index
    %0 = vector.load %arg2[%c0, %c0_0, %c0_1] : memref<1x8x8xbf16, #tpu.memory_space<vmem>>, vector<1x8x8xbf16>
    %1 = vector.shape_cast %0 : vector<1x8x8xbf16> to vector<8x8xbf16>
    %cst = arith.constant -1.000000e+30 : f32
    %2 = vector.broadcast %cst : f32 to vector<8x1xf32>
    %cst_2 = arith.constant 0.000000e+00 : f32
    %3 = vector.broadcast %cst_2 : f32 to vector<8x1xf32>
    %cst_3 = arith.constant 0.000000e+00 : f32
    %4 = vector.broadcast %cst_3 : f32 to vector<8x8xf32>
    %c0_i32 = arith.constant 0 : i32
    %5 = arith.subi %arg1, %c0_i32 : i32
    %6 = arith.addi %c0_i32, %5 : i32
    %c1_i32 = arith.constant 1 : i32
    %7:3 = scf.for %arg6 = %c0_i32 to %6 step %c1_i32 iter_args(%arg7 = %2, %arg8 = %3, %arg9 = %4) -> (vector<8x1xf32>, vector<8x1xf32>, vector<8x8xf32>)  : i32 {
      %c8_i32_16 = arith.constant 8 : i32
      %46 = arith.muli %arg6, %c8_i32_16 : i32
      %47 = tpu.assume_multiple %46, 8 : i32
      %c0_17 = arith.constant 0 : index
      %48 = arith.index_cast %47 : i32 to index
      %c0_18 = arith.constant 0 : index
      %49 = vector.load %arg3[%c0_17, %48, %c0_18] : memref<1x8x8xbf16, #tpu.memory_space<vmem>>, vector<1x8x8xbf16>
      %50 = vector.shape_cast %49 : vector<1x8x8xbf16> to vector<8x8xbf16>
      %c0_19 = arith.constant 0 : index
      %51 = arith.index_cast %47 : i32 to index
      %c0_20 = arith.constant 0 : index
      %52 = vector.load %arg4[%c0_19, %51, %c0_20] : memref<1x8x8xbf16, #tpu.memory_space<vmem>>, vector<1x8x8xbf16>
      %53 = vector.shape_cast %52 : vector<1x8x8xbf16> to vector<8x8xbf16>
      %cst_21 = arith.constant dense<0.000000e+00> : vector<8x8xf32>
      %54 = tpu.matmul %1, %50, %cst_21 {dimension_numbers = #tpu.dot_dimension_numbers<[1], [1], [0], [0], [0, 0, 1, 0], [], []>} : vector<8x8xbf16>, vector<8x8xbf16>, vector<8x8xf32> -> vector<8x8xf32>
      %cst_22 = arith.constant dense<0xFF800000> : vector<8xf32>
      %55 = vector.multi_reduction <maximumf>, %54, %cst_22 [1] : vector<8x8xf32> to vector<8xf32>
      %56 = vector.shape_cast %55 : vector<8xf32> to vector<8x1xf32>
      %57 = arith.maximumf %arg7, %56 : vector<8x1xf32>
      %58 = arith.subf %arg7, %57 : vector<8x1xf32>
      %59 = math.exp %58 : vector<8x1xf32>
      %60 = vector.broadcast %57 : vector<8x1xf32> to vector<8x8xf32>
      %61 = arith.subf %54, %60 : vector<8x8xf32>
      %62 = math.exp %61 : vector<8x8xf32>
      %63 = arith.mulf %59, %arg8 : vector<8x1xf32>
      %cst_23 = arith.constant dense<0.000000e+00> : vector<8xf32>
      %64 = vector.multi_reduction <add>, %62, %cst_23 [1] : vector<8x8xf32> to vector<8xf32>
      %65 = vector.shape_cast %64 : vector<8xf32> to vector<8x1xf32>
      %66 = arith.addf %63, %65 : vector<8x1xf32>
      %67 = vector.broadcast %59 : vector<8x1xf32> to vector<8x8xf32>
      %68 = arith.mulf %67, %arg9 : vector<8x8xf32>
      %69 = arith.truncf %62 : vector<8x8xf32> to vector<8x8xbf16>
      %cst_24 = arith.constant dense<0.000000e+00> : vector<8x8xf32>
      %70 = tpu.matmul %69, %53, %cst_24 {dimension_numbers = #tpu.dot_dimension_numbers<[1], [0], [0], [1], [0, 0, 1, 1], [], []>} : vector<8x8xbf16>, vector<8x8xbf16>, vector<8x8xf32> -> vector<8x8xf32>
      %71 = arith.addf %68, %70 : vector<8x8xf32>
      scf.yield %57, %66, %71 : vector<8x1xf32>, vector<8x1xf32>, vector<8x8xf32>
    }
    %8 = tpu.iota {dimensions = array<i32: 0>} : vector<8x8xi32>
    %9 = tpu.iota {dimensions = array<i32: 1>} : vector<8x8xi32>
    %c8_i32 = arith.constant 8 : i32
    %10 = arith.muli %arg1, %c8_i32 : i32
    %11 = tpu.assume_multiple %10, 8 : i32
    %12 = arith.cmpi sge, %8, %9 : vector<8x8xi32>
    %c0_4 = arith.constant 0 : index
    %13 = arith.index_cast %11 : i32 to index
    %c0_5 = arith.constant 0 : index
    %14 = vector.load %arg3[%c0_4, %13, %c0_5] : memref<1x8x8xbf16, #tpu.memory_space<vmem>>, vector<1x8x8xbf16>
    %15 = vector.shape_cast %14 : vector<1x8x8xbf16> to vector<8x8xbf16>
    %c0_6 = arith.constant 0 : index
    %16 = arith.index_cast %11 : i32 to index
    %c0_7 = arith.constant 0 : index
    %17 = vector.load %arg4[%c0_6, %16, %c0_7] : memref<1x8x8xbf16, #tpu.memory_space<vmem>>, vector<1x8x8xbf16>
    %18 = vector.shape_cast %17 : vector<1x8x8xbf16> to vector<8x8xbf16>
    %cst_8 = arith.constant dense<0.000000e+00> : vector<8x8xf32>
    %19 = tpu.matmul %1, %15, %cst_8 {dimension_numbers = #tpu.dot_dimension_numbers<[1], [1], [0], [0], [0, 0, 1, 0], [], []>} : vector<8x8xbf16>, vector<8x8xbf16>, vector<8x8xf32> -> vector<8x8xf32>
    %cst_9 = arith.constant -1.000000e+30 : f32
    %20 = vector.broadcast %cst_9 : f32 to vector<8x8xf32>
    %21 = arith.select %12, %19, %20 : vector<8x8xi1>, vector<8x8xf32>
    %cst_10 = arith.constant dense<0xFF800000> : vector<8xf32>
    %22 = vector.multi_reduction <maximumf>, %21, %cst_10 [1] : vector<8x8xf32> to vector<8xf32>
    %23 = vector.shape_cast %22 : vector<8xf32> to vector<8x1xf32>
    %24 = arith.maximumf %7#0, %23 : vector<8x1xf32>
    %25 = arith.subf %7#0, %24 : vector<8x1xf32>
    %26 = math.exp %25 : vector<8x1xf32>
    %27 = vector.broadcast %24 : vector<8x1xf32> to vector<8x8xf32>
    %28 = arith.subf %21, %27 : vector<8x8xf32>
    %29 = math.exp %28 : vector<8x8xf32>
    %30 = arith.mulf %26, %7#1 : vector<8x1xf32>
    %cst_11 = arith.constant dense<0.000000e+00> : vector<8xf32>
    %31 = vector.multi_reduction <add>, %29, %cst_11 [1] : vector<8x8xf32> to vector<8xf32>
    %32 = vector.shape_cast %31 : vector<8xf32> to vector<8x1xf32>
    %33 = arith.addf %30, %32 : vector<8x1xf32>
    %34 = vector.broadcast %26 : vector<8x1xf32> to vector<8x8xf32>
    %35 = arith.mulf %34, %7#2 : vector<8x8xf32>
    %36 = arith.truncf %29 : vector<8x8xf32> to vector<8x8xbf16>
    %cst_12 = arith.constant dense<0.000000e+00> : vector<8x8xf32>
    %37 = tpu.matmul %36, %18, %cst_12 {dimension_numbers = #tpu.dot_dimension_numbers<[1], [0], [0], [1], [0, 0, 1, 1], [], []>} : vector<8x8xbf16>, vector<8x8xbf16>, vector<8x8xf32> -> vector<8x8xf32>
    %38 = arith.addf %35, %37 : vector<8x8xf32>
    %39 = tpu.reciprocal %33 {approx = true} : vector<8x1xf32> -> vector<8x1xf32>
    %40 = vector.broadcast %39 : vector<8x1xf32> to vector<8x8xf32>
    %41 = arith.mulf %38, %40 : vector<8x8xf32>
    %42 = arith.truncf %41 : vector<8x8xf32> to vector<8x8xbf16>
    %c0_13 = arith.constant 0 : index
    %c0_14 = arith.constant 0 : index
    %c0_15 = arith.constant 0 : index
    %43 = vector.load %arg5[%c0_13, %c0_14, %c0_15] : memref<1x8x8xbf16, #tpu.memory_space<vmem>>, vector<1x8x8xbf16>
    %44 = vector.shape_cast %43 : vector<1x8x8xbf16> to vector<8x8xbf16>
    %45 = vector.shape_cast %42 : vector<8x8xbf16> to vector<1x8x8xbf16>
    tpu.vector_store %arg5[%c0_13, %c0_14, %c0_15], %45 {strides = array<i32>} : memref<1x8x8xbf16, #tpu.memory_space<vmem>>, vector<1x8x8xbf16>,
    return
  }
  func.func @transform_0(%arg0: i32, %arg1: i32) -> (i32, i32, i32) {
    %c0_i32 = arith.constant 0 : i32
    %c0_i32_0 = arith.constant 0 : i32
    return %arg0, %arg1, %c0_i32 : i32, i32, i32
  }
  func.func @transform_1(%arg0: i32, %arg1: i32) -> (i32, i32, i32) {
    %c0_i32 = arith.constant 0 : i32
    %c0_i32_0 = arith.constant 0 : i32
    %c0_i32_1 = arith.constant 0 : i32
    return %arg0, %c0_i32, %c0_i32_0 : i32, i32, i32
  }
  func.func @transform_2(%arg0: i32, %arg1: i32) -> (i32, i32, i32) {
    %c0_i32 = arith.constant 0 : i32
    %c0_i32_0 = arith.constant 0 : i32
    %c0_i32_1 = arith.constant 0 : i32
    return %arg0, %c0_i32, %c0_i32_0 : i32, i32, i32
  }
  func.func @transform_3(%arg0: i32, %arg1: i32) -> (i32, i32, i32) {
    %c0_i32 = arith.constant 0 : i32
    %c0_i32_0 = arith.constant 0 : i32
    return %arg0, %arg1, %c0_i32 : i32, i32, i32
  }
}

module attributes {stable_mosaic.version = 11 : i64} {
  func.func @proj_mlp_kernel(%arg0: i32, %arg1: memref<16x32xbf16, #tpu.memory_space<vmem>>, %arg2: memref<16x32xf32, #tpu.memory_space<vmem>>, %arg3: memref<32x32xbf16, #tpu.memory_space<vmem>>, %arg4: memref<1x32xf32, #tpu.memory_space<vmem>>, %arg5: memref<1x32xf32, #tpu.memory_space<vmem>>, %arg6: memref<1x32xf32, #tpu.memory_space<vmem>>, %arg7: memref<32x128xbf16, #tpu.memory_space<vmem>>, %arg8: memref<1x128xf32, #tpu.memory_space<vmem>>, %arg9: memref<128x32xbf16, #tpu.memory_space<vmem>>, %arg10: memref<1x32xf32, #tpu.memory_space<vmem>>, %arg11: memref<16x32xf32, #tpu.memory_space<vmem>>) attributes {dimension_semantics = [#tpu.dimension_semantics<parallel>], iteration_bounds = array<i64: 1>, scalar_prefetch = 0 : i64, scratch_operands = 0 : i64, tpu.core_type = #tpu.core_type<tc>, window_params = [{transform_indices = @transform_0, window_bounds = array<i64: 16, 32>}, {transform_indices = @transform_1, window_bounds = array<i64: 16, 32>}, {pipeline_mode = #tpu.pipeline_mode<synchronous>, transform_indices = @transform_2, window_bounds = array<i64: 32, 32>}, {pipeline_mode = #tpu.pipeline_mode<synchronous>, transform_indices = @transform_3, window_bounds = array<i64: 1, 32>}, {pipeline_mode = #tpu.pipeline_mode<synchronous>, transform_indices = @transform_4, window_bounds = array<i64: 1, 32>}, {pipeline_mode = #tpu.pipeline_mode<synchronous>, transform_indices = @transform_5, window_bounds = array<i64: 1, 32>}, {pipeline_mode = #tpu.pipeline_mode<synchronous>, transform_indices = @transform_6, window_bounds = array<i64: 32, 128>}, {pipeline_mode = #tpu.pipeline_mode<synchronous>, transform_indices = @transform_7, window_bounds = array<i64: 1, 128>}, {pipeline_mode = #tpu.pipeline_mode<synchronous>, transform_indices = @transform_8, window_bounds = array<i64: 128, 32>}, {pipeline_mode = #tpu.pipeline_mode<synchronous>, transform_indices = @transform_9, window_bounds = array<i64: 1, 32>}, {transform_indices = @transform_10, window_bounds = array<i64: 16, 32>}]} {
    %c0 = arith.constant 0 : index
    %c0_0 = arith.constant 0 : index
    %0 = vector.load %arg2[%c0, %c0_0] : memref<16x32xf32, #tpu.memory_space<vmem>>, vector<16x32xf32>
    %c0_1 = arith.constant 0 : index
    %c0_2 = arith.constant 0 : index
    %1 = vector.load %arg1[%c0_1, %c0_2] : memref<16x32xbf16, #tpu.memory_space<vmem>>, vector<16x32xbf16>
    %c0_3 = arith.constant 0 : index
    %c0_4 = arith.constant 0 : index
    %2 = vector.load %arg3[%c0_3, %c0_4] : memref<32x32xbf16, #tpu.memory_space<vmem>>, vector<32x32xbf16>
    %cst = arith.constant dense<0.000000e+00> : vector<16x32xf32>
    %3 = tpu.matmul %1, %2, %cst {dimension_numbers = #tpu.dot_dimension_numbers<[1], [0], [0], [1], [0, 0, 1, 1], [], []>} : vector<16x32xbf16>, vector<32x32xbf16>, vector<16x32xf32> -> vector<16x32xf32>
    %c0_5 = arith.constant 0 : index
    %c0_6 = arith.constant 0 : index
    %4 = vector.load %arg4[%c0_5, %c0_6] : memref<1x32xf32, #tpu.memory_space<vmem>>, vector<1x32xf32>
    %5 = vector.broadcast %4 : vector<1x32xf32> to vector<16x32xf32>
    %6 = arith.addf %3, %5 : vector<16x32xf32>
    %7 = arith.addf %0, %6 : vector<16x32xf32>
    %c0_7 = arith.constant 0 : index
    %c0_8 = arith.constant 0 : index
    %8 = vector.load %arg5[%c0_7, %c0_8] : memref<1x32xf32, #tpu.memory_space<vmem>>, vector<1x32xf32>
    %c0_9 = arith.constant 0 : index
    %c0_10 = arith.constant 0 : index
    %9 = vector.load %arg6[%c0_9, %c0_10] : memref<1x32xf32, #tpu.memory_space<vmem>>, vector<1x32xf32>
    %cst_11 = arith.constant dense<0.000000e+00> : vector<16xf32>
    %10 = vector.multi_reduction <add>, %7, %cst_11 [1] : vector<16x32xf32> to vector<16xf32>
    %11 = vector.shape_cast %10 : vector<16xf32> to vector<16x1xf32>
    %cst_12 = arith.constant 3.200000e+01 : f32
    %12 = vector.broadcast %cst_12 : f32 to vector<16x1xf32>
    %13 = arith.divf %11, %12 : vector<16x1xf32>
    %14 = vector.broadcast %13 : vector<16x1xf32> to vector<16x32xf32>
    %15 = arith.subf %7, %14 : vector<16x32xf32>
    %16 = arith.mulf %15, %15 : vector<16x32xf32>
    %cst_13 = arith.constant dense<0.000000e+00> : vector<16xf32>
    %17 = vector.multi_reduction <add>, %16, %cst_13 [1] : vector<16x32xf32> to vector<16xf32>
    %18 = vector.shape_cast %17 : vector<16xf32> to vector<16x1xf32>
    %cst_14 = arith.constant 3.200000e+01 : f32
    %19 = vector.broadcast %cst_14 : f32 to vector<16x1xf32>
    %20 = arith.divf %18, %19 : vector<16x1xf32>
    %cst_15 = arith.constant 9.99999974E-6 : f32
    %21 = vector.broadcast %cst_15 : f32 to vector<16x1xf32>
    %22 = arith.addf %20, %21 : vector<16x1xf32>
    %23 = math.rsqrt %22 : vector<16x1xf32>
    %24 = vector.broadcast %23 : vector<16x1xf32> to vector<16x32xf32>
    %25 = arith.mulf %15, %24 : vector<16x32xf32>
    %26 = vector.broadcast %8 : vector<1x32xf32> to vector<16x32xf32>
    %27 = arith.mulf %25, %26 : vector<16x32xf32>
    %28 = vector.broadcast %9 : vector<1x32xf32> to vector<16x32xf32>
    %29 = arith.addf %27, %28 : vector<16x32xf32>
    %30 = arith.truncf %29 : vector<16x32xf32> to vector<16x32xbf16>
    %c0_16 = arith.constant 0 : index
    %c0_17 = arith.constant 0 : index
    %31 = vector.load %arg7[%c0_16, %c0_17] : memref<32x128xbf16, #tpu.memory_space<vmem>>, vector<32x128xbf16>
    %cst_18 = arith.constant dense<0.000000e+00> : vector<16x128xf32>
    %32 = tpu.matmul %30, %31, %cst_18 {dimension_numbers = #tpu.dot_dimension_numbers<[1], [0], [0], [1], [0, 0, 1, 1], [], []>} : vector<16x32xbf16>, vector<32x128xbf16>, vector<16x128xf32> -> vector<16x128xf32>
    %c0_19 = arith.constant 0 : index
    %c0_20 = arith.constant 0 : index
    %33 = vector.load %arg8[%c0_19, %c0_20] : memref<1x128xf32, #tpu.memory_space<vmem>>, vector<1x128xf32>
    %34 = vector.broadcast %33 : vector<1x128xf32> to vector<16x128xf32>
    %35 = arith.addf %32, %34 : vector<16x128xf32>
    %cst_21 = arith.constant 5.000000e-01 : f32
    %36 = vector.broadcast %cst_21 : f32 to vector<16x128xf32>
    %37 = arith.mulf %36, %35 : vector<16x128xf32>
    %cst_22 = arith.constant 0.707106769 : f32
    %38 = vector.broadcast %cst_22 : f32 to vector<16x128xf32>
    %39 = arith.mulf %35, %38 : vector<16x128xf32>
    %cst_23 = arith.constant 0.000000e+00 : f32
    %40 = vector.broadcast %cst_23 : f32 to vector<16x128xf32>
    %41 = arith.cmpf oge, %39, %40 : vector<16x128xf32>
    %cst_24 = arith.constant 1.000000e+00 : f32
    %cst_25 = arith.constant -1.000000e+00 : f32
    %42 = vector.broadcast %cst_24 : f32 to vector<16x128xf32>
    %43 = vector.broadcast %cst_25 : f32 to vector<16x128xf32>
    %44 = arith.select %41, %42, %43 : vector<16x128xi1>, vector<16x128xf32>
    %45 = math.absf %39 : vector<16x128xf32>
    %cst_26 = arith.constant 0.327591091 : f32
    %46 = vector.broadcast %cst_26 : f32 to vector<16x128xf32>
    %47 = arith.mulf %46, %45 : vector<16x128xf32>
    %cst_27 = arith.constant 1.000000e+00 : f32
    %48 = vector.broadcast %cst_27 : f32 to vector<16x128xf32>
    %49 = arith.addf %48, %47 : vector<16x128xf32>
    %cst_28 = arith.constant 1.000000e+00 : f32
    %50 = vector.broadcast %cst_28 : f32 to vector<16x128xf32>
    %51 = arith.divf %50, %49 : vector<16x128xf32>
    %cst_29 = arith.constant 1.06140542 : f32
    %52 = vector.broadcast %cst_29 : f32 to vector<16x128xf32>
    %53 = arith.mulf %52, %51 : vector<16x128xf32>
    %cst_30 = arith.constant -1.45315206 : f32
    %54 = vector.broadcast %cst_30 : f32 to vector<16x128xf32>
    %55 = arith.addf %53, %54 : vector<16x128xf32>
    %56 = arith.mulf %55, %51 : vector<16x128xf32>
    %cst_31 = arith.constant 1.42141378 : f32
    %57 = vector.broadcast %cst_31 : f32 to vector<16x128xf32>
    %58 = arith.addf %56, %57 : vector<16x128xf32>
    %59 = arith.mulf %58, %51 : vector<16x128xf32>
    %cst_32 = arith.constant -0.284496725 : f32
    %60 = vector.broadcast %cst_32 : f32 to vector<16x128xf32>
    %61 = arith.addf %59, %60 : vector<16x128xf32>
    %62 = arith.mulf %61, %51 : vector<16x128xf32>
    %cst_33 = arith.constant 0.254829586 : f32
    %63 = vector.broadcast %cst_33 : f32 to vector<16x128xf32>
    %64 = arith.addf %62, %63 : vector<16x128xf32>
    %65 = arith.mulf %64, %51 : vector<16x128xf32>
    %cst_34 = arith.constant 0.000000e+00 : f32
    %66 = vector.broadcast %cst_34 : f32 to vector<16x128xf32>
    %67 = arith.subf %66, %45 : vector<16x128xf32>
    %68 = arith.mulf %67, %45 : vector<16x128xf32>
    %69 = math.exp %68 : vector<16x128xf32>
    %70 = arith.mulf %65, %69 : vector<16x128xf32>
    %cst_35 = arith.constant 1.000000e+00 : f32
    %71 = vector.broadcast %cst_35 : f32 to vector<16x128xf32>
    %72 = arith.subf %71, %70 : vector<16x128xf32>
    %73 = arith.mulf %44, %72 : vector<16x128xf32>
    %cst_36 = arith.constant 1.000000e+00 : f32
    %74 = vector.broadcast %cst_36 : f32 to vector<16x128xf32>
    %75 = arith.addf %74, %73 : vector<16x128xf32>
    %76 = arith.mulf %37, %75 : vector<16x128xf32>
    %77 = arith.truncf %76 : vector<16x128xf32> to vector<16x128xbf16>
    %c0_37 = arith.constant 0 : index
    %c0_38 = arith.constant 0 : index
    %78 = vector.load %arg9[%c0_37, %c0_38] : memref<128x32xbf16, #tpu.memory_space<vmem>>, vector<128x32xbf16>
    %cst_39 = arith.constant dense<0.000000e+00> : vector<16x32xf32>
    %79 = tpu.matmul %77, %78, %cst_39 {dimension_numbers = #tpu.dot_dimension_numbers<[1], [0], [0], [1], [0, 0, 1, 1], [], []>} : vector<16x128xbf16>, vector<128x32xbf16>, vector<16x32xf32> -> vector<16x32xf32>
    %c0_40 = arith.constant 0 : index
    %c0_41 = arith.constant 0 : index
    %80 = vector.load %arg10[%c0_40, %c0_41] : memref<1x32xf32, #tpu.memory_space<vmem>>, vector<1x32xf32>
    %81 = vector.broadcast %80 : vector<1x32xf32> to vector<16x32xf32>
    %82 = arith.addf %79, %81 : vector<16x32xf32>
    %83 = arith.addf %7, %82 : vector<16x32xf32>
    %c0_42 = arith.constant 0 : index
    %c0_43 = arith.constant 0 : index
    %84 = vector.load %arg11[%c0_42, %c0_43] : memref<16x32xf32, #tpu.memory_space<vmem>>, vector<16x32xf32>
    tpu.vector_store %arg11[%c0_42, %c0_43], %83 {strides = array<i32>} : memref<16x32xf32, #tpu.memory_space<vmem>>, vector<16x32xf32>,
    return
  }
  func.func @transform_0(%arg0: i32) -> (i32, i32) {
    %c0_i32 = arith.constant 0 : i32
    %c0_i32_0 = arith.constant 0 : i32
    return %arg0, %c0_i32 : i32, i32
  }
  func.func @transform_1(%arg0: i32) -> (i32, i32) {
    %c0_i32 = arith.constant 0 : i32
    %c0_i32_0 = arith.constant 0 : i32
    return %arg0, %c0_i32 : i32, i32
  }
  func.func @transform_2(%arg0: i32) -> (i32, i32) {
    %c0_i32 = arith.constant 0 : i32
    %c0_i32_0 = arith.constant 0 : i32
    %c0_i32_1 = arith.constant 0 : i32
    return %c0_i32, %c0_i32_0 : i32, i32
  }
  func.func @transform_3(%arg0: i32) -> (i32, i32) {
    %c0_i32 = arith.constant 0 : i32
    %c0_i32_0 = arith.constant 0 : i32
    %c0_i32_1 = arith.constant 0 : i32
    return %c0_i32, %c0_i32_0 : i32, i32
  }
  func.func @transform_4(%arg0: i32) -> (i32, i32) {
    %c0_i32 = arith.constant 0 : i32
    %c0_i32_0 = arith.constant 0 : i32
    %c0_i32_1 = arith.constant 0 : i32
    return %c0_i32, %c0_i32_0 : i32, i32
  }
  func.func @transform_5(%arg0: i32) -> (i32, i32) {
    %c0_i32 = arith.constant 0 : i32
    %c0_i32_0 = arith.constant 0 : i32
    %c0_i32_1 = arith.constant 0 : i32
    return %c0_i32, %c0_i32_0 : i32, i32
  }
  func.func @transform_6(%arg0: i32) -> (i32, i32) {
    %c0_i32 = arith.constant 0 : i32
    %c0_i32_0 = arith.constant 0 : i32
    %c0_i32_1 = arith.constant 0 : i32
    return %c0_i32, %c0_i32_0 : i32, i32
  }
  func.func @transform_7(%arg0: i32) -> (i32, i32) {
    %c0_i32 = arith.constant 0 : i32
    %c0_i32_0 = arith.constant 0 : i32
    %c0_i32_1 = arith.constant 0 : i32
    return %c0_i32, %c0_i32_0 : i32, i32
  }
  func.func @transform_8(%arg0: i32) -> (i32, i32) {
    %c0_i32 = arith.constant 0 : i32
    %c0_i32_0 = arith.constant 0 : i32
    %c0_i32_1 = arith.constant 0 : i32
    return %c0_i32, %c0_i32_0 : i32, i32
  }
  func.func @transform_9(%arg0: i32) -> (i32, i32) {
    %c0_i32 = arith.constant 0 : i32
    %c0_i32_0 = arith.constant 0 : i32
    %c0_i32_1 = arith.constant 0 : i32
    return %c0_i32, %c0_i32_0 : i32, i32
  }
  func.func @transform_10(%arg0: i32) -> (i32, i32) {
    %c0_i32 = arith.constant 0 : i32
    %c0_i32_0 = arith.constant 0 : i32
    return %arg0, %c0_i32 : i32, i32
  }
}

module attributes {stable_mosaic.version = 11 : i64} {
  func.func @lnf_head_kernel(%arg0: i32, %arg1: memref<2x32xf32, #tpu.memory_space<vmem>>, %arg2: memref<1x32xf32, #tpu.memory_space<vmem>>, %arg3: memref<1x32xf32, #tpu.memory_space<vmem>>, %arg4: memref<128x32xbf16, #tpu.memory_space<vmem>>, %arg5: memref<2x128xf32, #tpu.memory_space<vmem>>) attributes {dimension_semantics = [#tpu.dimension_semantics<parallel>], iteration_bounds = array<i64: 1>, scalar_prefetch = 0 : i64, scratch_operands = 0 : i64, tpu.core_type = #tpu.core_type<tc>, window_params = [{pipeline_mode = #tpu.pipeline_mode<synchronous>, transform_indices = @transform_0, window_bounds = array<i64: 2, 32>}, {pipeline_mode = #tpu.pipeline_mode<synchronous>, transform_indices = @transform_1, window_bounds = array<i64: 1, 32>}, {pipeline_mode = #tpu.pipeline_mode<synchronous>, transform_indices = @transform_2, window_bounds = array<i64: 1, 32>}, {transform_indices = @transform_3, window_bounds = array<i64: 128, 32>}, {transform_indices = @transform_4, window_bounds = array<i64: 2, 128>}]} {
    %c0 = arith.constant 0 : index
    %c0_0 = arith.constant 0 : index
    %0 = vector.load %arg1[%c0, %c0_0] : memref<2x32xf32, #tpu.memory_space<vmem>>, vector<2x32xf32>
    %c0_1 = arith.constant 0 : index
    %c0_2 = arith.constant 0 : index
    %1 = vector.load %arg2[%c0_1, %c0_2] : memref<1x32xf32, #tpu.memory_space<vmem>>, vector<1x32xf32>
    %c0_3 = arith.constant 0 : index
    %c0_4 = arith.constant 0 : index
    %2 = vector.load %arg3[%c0_3, %c0_4] : memref<1x32xf32, #tpu.memory_space<vmem>>, vector<1x32xf32>
    %cst = arith.constant dense<0.000000e+00> : vector<2xf32>
    %3 = vector.multi_reduction <add>, %0, %cst [1] : vector<2x32xf32> to vector<2xf32>
    %4 = vector.shape_cast %3 : vector<2xf32> to vector<2x1xf32>
    %cst_5 = arith.constant 3.200000e+01 : f32
    %5 = vector.broadcast %cst_5 : f32 to vector<2x1xf32>
    %6 = arith.divf %4, %5 : vector<2x1xf32>
    %7 = vector.broadcast %6 : vector<2x1xf32> to vector<2x32xf32>
    %8 = arith.subf %0, %7 : vector<2x32xf32>
    %9 = arith.mulf %8, %8 : vector<2x32xf32>
    %cst_6 = arith.constant dense<0.000000e+00> : vector<2xf32>
    %10 = vector.multi_reduction <add>, %9, %cst_6 [1] : vector<2x32xf32> to vector<2xf32>
    %11 = vector.shape_cast %10 : vector<2xf32> to vector<2x1xf32>
    %cst_7 = arith.constant 3.200000e+01 : f32
    %12 = vector.broadcast %cst_7 : f32 to vector<2x1xf32>
    %13 = arith.divf %11, %12 : vector<2x1xf32>
    %cst_8 = arith.constant 9.99999974E-6 : f32
    %14 = vector.broadcast %cst_8 : f32 to vector<2x1xf32>
    %15 = arith.addf %13, %14 : vector<2x1xf32>
    %16 = math.rsqrt %15 : vector<2x1xf32>
    %17 = vector.broadcast %16 : vector<2x1xf32> to vector<2x32xf32>
    %18 = arith.mulf %8, %17 : vector<2x32xf32>
    %19 = vector.broadcast %1 : vector<1x32xf32> to vector<2x32xf32>
    %20 = arith.mulf %18, %19 : vector<2x32xf32>
    %21 = vector.broadcast %2 : vector<1x32xf32> to vector<2x32xf32>
    %22 = arith.addf %20, %21 : vector<2x32xf32>
    %23 = arith.truncf %22 : vector<2x32xf32> to vector<2x32xbf16>
    %c0_9 = arith.constant 0 : index
    %c0_10 = arith.constant 0 : index
    %24 = vector.load %arg4[%c0_9, %c0_10] : memref<128x32xbf16, #tpu.memory_space<vmem>>, vector<128x32xbf16>
    %cst_11 = arith.constant dense<0.000000e+00> : vector<2x128xf32>
    %25 = tpu.matmul %23, %24, %cst_11 {dimension_numbers = #tpu.dot_dimension_numbers<[1], [1], [0], [0], [0, 0, 1, 0], [], []>} : vector<2x32xbf16>, vector<128x32xbf16>, vector<2x128xf32> -> vector<2x128xf32>
    %c0_12 = arith.constant 0 : index
    %c0_13 = arith.constant 0 : index
    %26 = vector.load %arg5[%c0_12, %c0_13] : memref<2x128xf32, #tpu.memory_space<vmem>>, vector<2x128xf32>
    tpu.vector_store %arg5[%c0_12, %c0_13], %25 {strides = array<i32>} : memref<2x128xf32, #tpu.memory_space<vmem>>, vector<2x128xf32>,
    return
  }
  func.func @transform_0(%arg0: i32) -> (i32, i32) {
    %c0_i32 = arith.constant 0 : i32
    %c0_i32_0 = arith.constant 0 : i32
    %c0_i32_1 = arith.constant 0 : i32
    return %c0_i32, %c0_i32_0 : i32, i32
  }
  func.func @transform_1(%arg0: i32) -> (i32, i32) {
    %c0_i32 = arith.constant 0 : i32
    %c0_i32_0 = arith.constant 0 : i32
    %c0_i32_1 = arith.constant 0 : i32
    return %c0_i32, %c0_i32_0 : i32, i32
  }
  func.func @transform_2(%arg0: i32) -> (i32, i32) {
    %c0_i32 = arith.constant 0 : i32
    %c0_i32_0 = arith.constant 0 : i32
    %c0_i32_1 = arith.constant 0 : i32
    return %c0_i32, %c0_i32_0 : i32, i32
  }
  func.func @transform_3(%arg0: i32) -> (i32, i32) {
    %c0_i32 = arith.constant 0 : i32
    %c0_i32_0 = arith.constant 0 : i32
    return %arg0, %c0_i32 : i32, i32
  }
  func.func @transform_4(%arg0: i32) -> (i32, i32) {
    %c0_i32 = arith.constant 0 : i32
    %c0_i32_0 = arith.constant 0 : i32
    return %c0_i32, %arg0 : i32, i32
  }
}

</mosaic_0001>

<llo_original>
// kernel: gpt_forward.7
$region0: #{gpt_forward.7}
  #allocation0 [shape = 'u32[]', space=smem, size = 0x4, offset = 0x4, fixed_abs, tag = 'smem constant byte address 0x4 - core index']
  #allocation1 [shape = 'u32[144,128]{1,0:T(1,128)}', space=vmem, size = 0x12000, scoped, tag = 'internal scratch']
  %s0 = inlined_call_operand.vmem [shape: f32[16,32], index: 0, kind: input, shape index: {}]
  %s1 = inlined_call_operand.vmem [shape: f32[1,32], index: 1, kind: input, shape index: {}]
  %s2 = inlined_call_operand.vmem [shape: f32[1,32], index: 2, kind: input, shape index: {}]
  %s3 = inlined_call_operand.vmem [shape: bf16[32,96], index: 3, kind: input, shape index: {}]
  %s4 = inlined_call_operand.vmem [shape: f32[1,96], index: 4, kind: input, shape index: {}]
  %s5 = inlined_call_operand.vmem [shape: bf16[16,96], index: 5, kind: output, shape index: {}]
  %s6 = sld [smem:[#allocation0]]
  $region30: #{gpt_forward.7} parent=0
    _
  %s8 = ssub.s32 1, %s6
  %s9 = scalar_select 0, %s8, %s6
  // Predicated region
  $region2: #{gpt_forward.7} parent=0 // pred_check
    _
  $region3: #{gpt_forward.7} parent=0 // pred_check_branch
    %11 = sbr.rel (0) target = $region5
  $region4: #{gpt_forward.7} parent=0 // pred_region
    _
  $region5: #{gpt_forward.7} parent=0 // pred_fallthru
    _
  // Predicated region
  $region6: #{gpt_forward.7} parent=0 // pred_check
    _
  $region7: #{gpt_forward.7} parent=0 // pred_check_branch
    %13 = sbr.rel (0) target = $region9
  $region8: #{gpt_forward.7} parent=0 // pred_region
    _
  $region9: #{gpt_forward.7} parent=0 // pred_fallthru
    _
  // Predicated region
  $region10: #{gpt_forward.7} parent=0 // pred_check
    _
  $region11: #{gpt_forward.7} parent=0 // pred_check_branch
    %15 = sbr.rel (0) target = $region13
  $region12: #{gpt_forward.7} parent=0 // pred_region
    _
  $region13: #{gpt_forward.7} parent=0 // pred_fallthru
    _
  // Predicated region
  $region14: #{gpt_forward.7} parent=0 // pred_check
    _
  $region15: #{gpt_forward.7} parent=0 // pred_check_branch
    %17 = sbr.rel (0) target = $region17
  $region16: #{gpt_forward.7} parent=0 // pred_region
    _
  $region17: #{gpt_forward.7} parent=0 // pred_fallthru
    _
  // Predicated region
  $region18: #{gpt_forward.7} parent=0 // pred_check
    _
  $region19: #{gpt_forward.7} parent=0 // pred_check_branch
    %19 = sbr.rel (0) target = $region21
  $region20: #{gpt_forward.7} parent=0 // pred_region
    _
  $region21: #{gpt_forward.7} parent=0 // pred_fallthru
    _
  %v21 = vld [vmem:[%s0] sm:$0xff]
  %v22 = vld [vmem:[%s0 + $0x8] sm:$0xff]
  %v23 = vld [vmem:[%s1] sm:$0x1]
  %v24 = vld [vmem:[%s2] sm:$0x1]
  %vm25 = vcmask 261120
  %v26 = vsel %vm25, %v21, 0.0
  %27 = vadd.xlane.f32.xlu0 %v26
  %v28 = vpop.xlane.xlu0 %27
  %v29 = vsel %vm25, %v22, 0.0
  %30 = vadd.xlane.f32.xlu0 %v29
  %v31 = vpop.xlane.xlu0 %30
  %v32 = vrcp.pop 32.0
  %v33 = vmul.f32 %v28, %v32
  %v34 = vmul.f32 %v31, %v32
  %v35 = vsub.f32 %v21, %v33
  %v36 = vsub.f32 %v22, %v34
  %v37 = vmul.f32 %v35, %v35
  %v38 = vmul.f32 %v36, %v36
  %v39 = vsel %vm25, %v37, 0.0
  %40 = vadd.xlane.f32.xlu0 %v39
  %v41 = vpop.xlane.xlu0 %40
  %v42 = vsel %vm25, %v38, 0.0
  %43 = vadd.xlane.f32.xlu0 %v42
  %v44 = vpop.xlane.xlu0 %43
  %v45 = vmul.f32 %v41, %v32
  %v46 = vmul.f32 %v44, %v32
  %v47 = vadd.f32 %v45, 1e-05
  %v48 = vadd.f32 %v46, 1e-05
  %v49 = vrsqrt.pop %v47
  %v50 = vrsqrt.pop %v48
  %v51 = vmul.f32 %v35, %v49
  %v52 = vmul.f32 %v36, %v50
  %v54 = vlaneseq
  %v55 = vshrl.u32 %v54, 7
  %v56 = vsub.s32 0, %v55
  %v57 = vrot.slane %v23, %v56
  %v59 = vmul.f32 %v51, %v57
  %v60 = vmul.f32 %v52, %v57
  %v62 = vlaneseq
  %v63 = vshrl.u32 %v62, 7
  %v64 = vsub.s32 0, %v63
  %v65 = vrot.slane %v24, %v64
  %v67 = vadd.f32 %v59, %v65
  %v68 = vadd.f32 %v60, %v65
  %v69 = vpack.c.bf16 %v68, %v67
  %v70 = vld [vmem:[%s3] sm:$0xf]
  %v71 = vld [vmem:[%s3 + $0x4] sm:$0xf]
  %v72 = vld [vmem:[%s3 + $0x8] sm:$0xf]
  %v73 = vld [vmem:[%s3 + $0xc] sm:$0xf]
  %v74 = vld [vmem:[%s4] sm:$0x1]
  %v76 = vlaneseq
  %v77 = vshrl.u32 %v76, 7
  %v78 = vsub.s32 0, %v77
  %v79 = vrot.slane %v74, %v78
  %v85 = vunpack.c.l.b16 %v70
  %v86 = vunpack.c.l.b16 %v71
  %v87 = vunpack.c.l.b16 %v72
  %v88 = vunpack.c.l.b16 %v73
  %v89 = vpack.c.b16 %v86, %v85
  %v90 = vpack.c.b16 %v88, %v87
  %v94 = vsel %vm25, %v69, 0
  %96 = vmatprep.subr.bf16.mxu0 0
  %97 = vmatpush1.bf16.msra.mxu0 %v89
  %98 = vmatprep.subr.bf16.mxu0 0
  %99 = vmatpush1.bf16.msra.mxu0 %v90
  %100 = vmatprep.subr.bf16.mxu0 0
  %101 = vmatpush1.bf16.msra.mxu0 0
  %102 = vmatprep.subr.bf16.mxu0 0
  %103 = vmatpush1.bf16.msra.mxu0 0
  %104 = vmatprep.subr.bf16.mxu0 0
  %105 = vmatpush1.bf16.msra.mxu0 0
  %106 = vmatprep.subr.bf16.mxu0 0
  %107 = vmatpush1.bf16.msra.mxu0 0
  %108 = vmatprep.subr.bf16.mxu0 0
  %109 = vmatpush1.bf16.msra.mxu0 0
  %110 = vmatprep.subr.bf16.mxu0 0
  %111 = vmatpush1.bf16.msra.mxu0 0
  %112 = vmatprep.subr.bf16.mxu0 0
  %113 = vmatpush1.bf16.msra.mxu0 0
  %114 = vmatprep.subr.bf16.mxu0 0
  %115 = vmatpush1.bf16.msra.mxu0 0
  %116 = vmatprep.subr.bf16.mxu0 0
  %117 = vmatpush1.bf16.msra.mxu0 0
  %118 = vmatprep.subr.bf16.mxu0 0
  %119 = vmatpush1.bf16.msra.mxu0 0
  %120 = vmatprep.subr.bf16.mxu0 0
  %121 = vmatpush1.bf16.msra.mxu0 0
  %122 = vmatprep.subr.bf16.mxu0 0
  %123 = vmatpush1.bf16.msra.mxu0 0
  %124 = vmatprep.subr.bf16.mxu0 0
  %125 = vmatpush1.bf16.msra.mxu0 0
  %126 = vmatprep.subr.bf16.mxu0 0
  %127 = vmatpush1.bf16.msra.mxu0 0
  %128 = vmatprep.mubr.bf16.mxu0 0
  %129 = vmatmul.mubr.bf16.gmra.mrb[0].mxu0 %v94
  %v130 = vpop.f32.mrb[0].mxu0
  %v131 = vadd.f32 %v79, %v130
  %v132 = vpop.f32.mrb[0].mxu0
  %v133 = vpop.f32.mrb[0].mxu0
  %v134 = vadd.f32 %v79, %v133
  %v135 = vpop.f32.mrb[0].mxu0
  %136 = vdwg.mxu0
  %v137 = vpack.c.bf16 %v134, %v131
  %v139 = vunpack.c.l.b16 %v137
  %v140 = vunpack.c.h.b16 %v137
  %v141 = vpack.c.b16 %v139, %v139
  %v142 = vpack.c.b16 %v140, %v140
  %vm145 = vcmask 781312
  %146 = vst.msk [vmem:[%s5] sm:$0xf] %vm145, %v141
  %147 = vst.msk [vmem:[%s5 + $0x4] sm:$0xf] %vm145, %v142
  // Predicated region
  $region22: #{gpt_forward.7} parent=0 // pred_check
    _
  $region23: #{gpt_forward.7} parent=0 // pred_check_branch
    %149 = sbr.rel (0) target = $region25
  $region24: #{gpt_forward.7} parent=0 // pred_region
    _
  $region25: #{gpt_forward.7} parent=0 // pred_fallthru
    _
  // Predicated region
  $region26: #{gpt_forward.7} parent=0 // pred_check
    _
  $region27: #{gpt_forward.7} parent=0 // pred_check_branch
    %151 = sbr.rel (0) target = $region29
  $region28: #{gpt_forward.7} parent=0 // pred_region
    _
  $region29: #{gpt_forward.7} parent=0 // pred_fallthru
    _

// kernel: gpt_forward.8
$region0: #{gpt_forward.8}
  #allocation0 [shape = 'u32[]', space=smem, size = 0x4, offset = 0x4, fixed_abs, tag = 'smem constant byte address 0x4 - core index']
  #allocation1 [shape = 'u32[144,128]{1,0:T(1,128)}', space=vmem, size = 0x12000, scoped, tag = 'internal scratch']
  %s0 = inlined_call_operand.vmem [shape: bf16[8,8,8], index: 0, kind: input, shape index: {}]
  %s1 = inlined_call_operand.vmem [shape: bf16[8,8,8], index: 1, kind: input, shape index: {}]
  %s2 = inlined_call_operand.vmem [shape: bf16[8,8,8], index: 2, kind: input, shape index: {}]
  %s3 = inlined_call_operand.vmem [shape: bf16[8,8,8], index: 3, kind: output, shape index: {}]
  %s4 = sld [smem:[#allocation0]]
  $region52: #{gpt_forward.8} parent=0
    _
  %s6 = ssub.s32 1, %s4
  %s7 = scalar_select 0, %s6, %s4
  loop: start=0, step=1, limit=10
  $region2: #{gpt_forward.8} parent=0 // loop_pre_header
    _
  $region3: #{gpt_forward.8} parent=0 // loop_header
    %s9 = sphi 0, %s13
    %p10 = scmp.ge.s32.totalorder %s9, 10
    %s16 = sphi 0, %s28
    %s17 = sphi 0, %s24
    %s18 = sphi 0, %s16
    %s19 = sphi 0, %s17
    %s20 = sphi 0, %s18
    %s21 = sphi 0, %s19
    %s33 = sphi 0, %s35
    %s36 = sphi 0, %s33
    %s37 = sphi 0, %s36
    %s53 = sphi 0, %s37
    %s59 = sphi 0, %s61
    %s62 = sphi 0, %s59
    %s63 = sphi 0, %s62
    %s79 = sphi 0, %s63
    %s85 = sphi 0, %s87
    %s88 = sphi 0, %s85
    %s89 = sphi 0, %s88
    %s105 = sphi 0, %s89
    %s113 = sphi 0, %s115
    %s116 = sphi 0, %s113
    %s117 = sphi 0, %s116
    %s133 = sphi 0, %s117
  $region4: #{gpt_forward.8} parent=0 // loop_header_branch
    %12 = sbr.rel (%p10) target = $region8
  $region5: #{gpt_forward.8} parent=0 // loop_body
    %s14 = ssub.s32 %s9, 1
    %s15 = ssub.s32 %s9, 2
    %s22 = sadd.s32 1, %s17
    %p23 = scmp.ge.s32.totalorder %s22, 1
    %s24 = scalar_select %p23, 0, %s22
    %s25 = sadd.s32 1, %s16
    %s26 = scalar_select %p23, %s25, %s16
    %p27 = scmp.ge.s32.totalorder %s26, 8
    %s28 = scalar_select %p27, 0, %s26
    %s29 = ssub.s32 %s16, %s28
    %s30 = ssub.s32 %s17, %s24
    %s31 = sor.u32 %s29, %s30
    %p32 = scmp.eq.s32.totalorder %s31, 0
    %s34 = sadd.s32 %s33, 1
    %s35 = scalar_select %p32, %s33, %s34
    %p38 = pneg %p32
    %p39 = scmp.eq.s32.totalorder %s9, 7
    %p40 = por %p38, %p39
    %p41 = scmp.ne.s32.totalorder %s33, %s36
    %p42 = scmp.eq.s32.totalorder %s9, 0
    %p43 = por %p41, %p42
    %p44 = scmp.ne.s32.totalorder %s33, %s36
    %p45 = scmp.eq.s32.totalorder %s14, 7
    %p46 = por %p44, %p45
    %p47 = scmp.ne.s32.totalorder %s36, %s37
    %p48 = scmp.eq.s32.totalorder %s14, 0
    %p49 = por %p47, %p48
    %p50 = scmp.ne.s32.totalorder %s36, %s37
    %p51 = scmp.eq.s32.totalorder %s15, 7
    %p52 = por %p50, %p51
    %p54 = scmp.ne.s32.totalorder %s37, %s53
    %p55 = scmp.eq.s32.totalorder %s15, 0
    %p56 = por %p54, %p55
    %s57 = ssub.s32 %s16, %s28
    %p58 = scmp.eq.s32.totalorder %s57, 0
    %s60 = sadd.s32 %s59, 1
    %s61 = scalar_select %p58, %s59, %s60
    %p64 = pneg %p58
    %p65 = scmp.eq.s32.totalorder %s9, 7
    %p66 = por %p64, %p65
    %p67 = scmp.ne.s32.totalorder %s59, %s62
    %p68 = scmp.eq.s32.totalorder %s9, 0
    %p69 = por %p67, %p68
    %p70 = scmp.ne.s32.totalorder %s59, %s62
    %p71 = scmp.eq.s32.totalorder %s14, 7
    %p72 = por %p70, %p71
    %p73 = scmp.ne.s32.totalorder %s62, %s63
    %p74 = scmp.eq.s32.totalorder %s14, 0
    %p75 = por %p73, %p74
    %p76 = scmp.ne.s32.totalorder %s62, %s63
    %p77 = scmp.eq.s32.totalorder %s15, 7
    %p78 = por %p76, %p77
    %p80 = scmp.ne.s32.totalorder %s63, %s79
    %p81 = scmp.eq.s32.totalorder %s15, 0
    %p82 = por %p80, %p81
    %s83 = ssub.s32 %s16, %s28
    %p84 = scmp.eq.s32.totalorder %s83, 0
    %s86 = sadd.s32 %s85, 1
    %s87 = scalar_select %p84, %s85, %s86
    %p90 = pneg %p84
    %p91 = scmp.eq.s32.totalorder %s9, 7
    %p92 = por %p90, %p91
    %p93 = scmp.ne.s32.totalorder %s85, %s88
    %p94 = scmp.eq.s32.totalorder %s9, 0
    %p95 = por %p93, %p94
    %p96 = scmp.ne.s32.totalorder %s85, %s88
    %p97 = scmp.eq.s32.totalorder %s14, 7
    %p98 = por %p96, %p97
    %p99 = scmp.ne.s32.totalorder %s88, %s89
    %p100 = scmp.eq.s32.totalorder %s14, 0
    %p101 = por %p99, %p100
    %p102 = scmp.ne.s32.totalorder %s88, %s89
    %p103 = scmp.eq.s32.totalorder %s15, 7
    %p104 = por %p102, %p103
    %p106 = scmp.ne.s32.totalorder %s89, %s105
    %p107 = scmp.eq.s32.totalorder %s15, 0
    %p108 = por %p106, %p107
    %s109 = ssub.s32 %s16, %s28
    %s110 = ssub.s32 %s17, %s24
    %s111 = sor.u32 %s109, %s110
    %p112 = scmp.eq.s32.totalorder %s111, 0
    %s114 = sadd.s32 %s113, 1
    %s115 = scalar_select %p112, %s113, %s114
    %p118 = pneg %p112
    %p119 = scmp.eq.s32.totalorder %s9, 7
    %p120 = por %p118, %p119
    %p121 = scmp.ne.s32.totalorder %s113, %s116
    %p122 = scmp.eq.s32.totalorder %s9, 0
    %p123 = por %p121, %p122
    %p124 = scmp.ne.s32.totalorder %s113, %s116
    %p125 = scmp.eq.s32.totalorder %s14, 7
    %p126 = por %p124, %p125
    %p127 = scmp.ne.s32.totalorder %s116, %s117
    %p128 = scmp.eq.s32.totalorder %s14, 0
    %p129 = por %p127, %p128
    %p130 = scmp.ne.s32.totalorder %s116, %s117
    %p131 = scmp.eq.s32.totalorder %s15, 7
    %p132 = por %p130, %p131
    %p134 = scmp.ne.s32.totalorder %s117, %s133
    %p135 = scmp.eq.s32.totalorder %s15, 0
    %p136 = por %p134, %p135
    %p137 = scmp.le.s32.totalorder 1, %s9
    %p138 = scmp.lt.s32.totalorder %s9, 9
    %p139 = pnand %p137, %p138
    %p140 = pneg %p139
    // Predicated region
    $region9: #{gpt_forward.8} parent=5 // pred_check
      _
    $region10: #{gpt_forward.8} parent=5 // pred_check_branch
      %142 = sbr.rel (%p139) target = $region12
    $region11: #{gpt_forward.8} parent=5 // pred_region
      %s143 = ssub.s32 %s9, 1
    $region12: #{gpt_forward.8} parent=5 // pred_fallthru
      _
    %p144 = scmp.lt.s32.totalorder %s9, 8
    // Predicated region
    $region13: #{gpt_forward.8} parent=5 // pred_check
      %p145 = pneg %p144
    $region14: #{gpt_forward.8} parent=5 // pred_check_branch
      %147 = sbr.rel (%p145) target = $region16
    $region15: #{gpt_forward.8} parent=5 // pred_region
      // Predicated region
      $region17: #{gpt_forward.8} parent=15 // pred_check
        %p148 = pneg %p43
      $region18: #{gpt_forward.8} parent=15 // pred_check_branch
        %150 = sbr.rel (%p148) target = $region20
      $region19: #{gpt_forward.8} parent=15 // pred_region
        %p151 = scmp.lt.s32.totalorder %s16, 7
        %s152 = scalar_select %p151, %s16, 7
        %p153 = scmp.lt.s32.totalorder %s17, 0
        %s154 = scalar_select %p153, %s17, 0
        %s155 = sadd.s32 %s154, %s152
        %s156 = smul.addr %s155, 4
        %s157 = scalar_lea.vmem %s0, %s156
      $region20: #{gpt_forward.8} parent=15 // pred_fallthru
        _
      // Predicated region
      $region21: #{gpt_forward.8} parent=15 // pred_check
        %p158 = pneg %p69
      $region22: #{gpt_forward.8} parent=15 // pred_check_branch
        %160 = sbr.rel (%p158) target = $region24
      $region23: #{gpt_forward.8} parent=15 // pred_region
        %p161 = scmp.lt.s32.totalorder %s16, 7
        %s162 = scalar_select %p161, %s16, 7
        %s163 = smul.addr %s162, 4
        %s164 = scalar_lea.vmem %s1, %s163
      $region24: #{gpt_forward.8} parent=15 // pred_fallthru
        _
      // Predicated region
      $region25: #{gpt_forward.8} parent=15 // pred_check
        %p165 = pneg %p95
      $region26: #{gpt_forward.8} parent=15 // pred_check_branch
        %167 = sbr.rel (%p165) target = $region28
      $region27: #{gpt_forward.8} parent=15 // pred_region
        %p168 = scmp.lt.s32.totalorder %s16, 7
        %s169 = scalar_select %p168, %s16, 7
        %s170 = smul.addr %s169, 4
        %s171 = scalar_lea.vmem %s2, %s170
      $region28: #{gpt_forward.8} parent=15 // pred_fallthru
        _
    $region16: #{gpt_forward.8} parent=5 // pred_fallthru
      _
    %p172 = scmp.le.s32.totalorder 1, %s9
    %p173 = scmp.lt.s32.totalorder %s9, 9
    %p174 = pnand %p172, %p173
    %p175 = pneg %p174
    // Predicated region
    $region29: #{gpt_forward.8} parent=5 // pred_check
      _
    $region30: #{gpt_forward.8} parent=5 // pred_check_branch
      %177 = sbr.rel (%p174) target = $region32
    $region31: #{gpt_forward.8} parent=5 // pred_region
      %s178 = ssub.s32 %s9, 1
      %p179 = scmp.lt.s32.totalorder %s18, 7
      %s180 = scalar_select %p179, %s18, 7
      %p181 = scmp.lt.s32.totalorder %s19, 0
      %s182 = scalar_select %p181, %s19, 0
      %s183 = sadd.s32 %s182, %s180
      %s184 = smul.addr %s183, 4
      %s185 = scalar_lea.vmem %s0, %s184
      %p186 = pneg %p49
      %p187 = pneg %p46
      %p188 = scmp.lt.s32.totalorder %s18, 7
      %s189 = scalar_select %p188, %s18, 7
      %s190 = smul.addr %s189, 4
      %s191 = scalar_lea.vmem %s1, %s190
      %p192 = pneg %p75
      %p193 = pneg %p72
      %p194 = scmp.lt.s32.totalorder %s18, 7
      %s195 = scalar_select %p194, %s18, 7
      %s196 = smul.addr %s195, 4
      %s197 = scalar_lea.vmem %s2, %s196
      %p198 = pneg %p101
      %p199 = pneg %p98
      %p200 = pneg %p129
      %p201 = pneg %p126
      %p202 = scmp.lt.s32.totalorder %s18, 7
      %s203 = scalar_select %p202, %s18, 7
      %p204 = scmp.lt.s32.totalorder %s19, 0
      %s205 = scalar_select %p204, %s19, 0
      %s206 = sadd.s32 %s205, %s203
      %s207 = smul.addr %s206, 4
      %s208 = scalar_lea.vmem %s3, %s207
      %p209 = scmp.lt.s32.totalorder %s18, 7
      %s210 = scalar_select %p209, %s18, 7
      %p211 = scmp.lt.s32.totalorder %s19, 0
      %s212 = scalar_select %p211, %s19, 0
      %s213 = sadd.s32 %s212, %s210
      %s214 = smul.addr %s213, 4
      %s215 = scalar_lea.vmem %s0, %s214
      %p216 = scmp.lt.s32.totalorder %s18, 7
      %s217 = scalar_select %p216, %s18, 7
      %s218 = smul.addr %s217, 4
      %s219 = scalar_lea.vmem %s1, %s218
      %p220 = scmp.lt.s32.totalorder %s18, 7
      %s221 = scalar_select %p220, %s18, 7
      %s222 = smul.addr %s221, 4
      %s223 = scalar_lea.vmem %s2, %s222
      %p224 = scmp.lt.s32.totalorder %s18, 7
      %s225 = scalar_select %p224, %s18, 7
      %p226 = scmp.lt.s32.totalorder %s19, 0
      %s227 = scalar_select %p226, %s19, 0
      %s228 = sadd.s32 %s227, %s225
      %s229 = smul.addr %s228, 4
      %s230 = scalar_lea.vmem %s3, %s229
      %v232 = vld [vmem:[%s215] sm:$0xf]
      // While loop
      $region33: #{gpt_forward.8} parent=31 // loop_pre_header
        _
      $region34: #{gpt_forward.8} parent=31 // loop_header
        %s234 = sphi 0, %s236
        %p235 = scmp.ge.s32.totalorder %s234, %s19
        %v239 = vphi -1e+30, %v301
        %v240 = vphi 0.0, %v312
        %v241 = vphi 0.0, %v362
      $region35: #{gpt_forward.8} parent=31 // loop_header_branch
        %238 = sbr.rel (%p235) target = $region39
      $region36: #{gpt_forward.8} parent=31 // loop_body
        %s242 = smul.u32 %s234, 8
        %s243 = sshra.s32 %s242, 3
        %s244 = sand.u32 %s242, 7
        %s245 = smul.addr %s243, 4
        %s246 = scalar_lea.vmem %s219, %s245
        %v247 = vld [vmem:[%s246] sm:$0xf]
        %s248 = smul.addr %s243, 4
        %s249 = scalar_lea.vmem %s223, %s248
        %v250 = vld [vmem:[%s249] sm:$0xf]
        %vm251 = vcmask 64512
        %v253 = vsel %vm251, %v232, 0
        %v256 = vsel %vm251, %v247, 0
        %258 = vmatprep.subr.bf16.mxu0 0
        %259 = vmatpush1.bf16.xpose.msra.mxu0 %v256
        %260 = vmatprep.subr.bf16.mxu0 0
        %261 = vmatpush1.bf16.xpose.msra.mxu0 0
        %262 = vmatprep.subr.bf16.mxu0 0
        %263 = vmatpush1.bf16.xpose.msra.mxu0 0
        %264 = vmatprep.subr.bf16.mxu0 0
        %265 = vmatpush1.bf16.xpose.msra.mxu0 0
        %266 = vmatprep.subr.bf16.mxu0 0
        %267 = vmatpush1.bf16.xpose.msra.mxu0 0
        %268 = vmatprep.subr.bf16.mxu0 0
        %269 = vmatpush1.bf16.xpose.msra.mxu0 0
        %270 = vmatprep.subr.bf16.mxu0 0
        %271 = vmatpush1.bf16.xpose.msra.mxu0 0
        %272 = vmatprep.subr.bf16.mxu0 0
        %273 = vmatpush1.bf16.xpose.msra.mxu0 0
        %274 = vmatprep.subr.bf16.mxu0 0
        %275 = vmatpush1.bf16.xpose.msra.mxu0 0
        %276 = vmatprep.subr.bf16.mxu0 0
        %277 = vmatpush1.bf16.xpose.msra.mxu0 0
        %278 = vmatprep.subr.bf16.mxu0 0
        %279 = vmatpush1.bf16.xpose.msra.mxu0 0
        %280 = vmatprep.subr.bf16.mxu0 0
        %281 = vmatpush1.bf16.xpose.msra.mxu0 0
        %282 = vmatprep.subr.bf16.mxu0 0
        %283 = vmatpush1.bf16.xpose.msra.mxu0 0
        %284 = vmatprep.subr.bf16.mxu0 0
        %285 = vmatpush1.bf16.xpose.msra.mxu0 0
        %286 = vmatprep.subr.bf16.mxu0 0
        %287 = vmatpush1.bf16.xpose.msra.mxu0 0
        %288 = vmatprep.subr.bf16.mxu0 0
        %289 = vmatpush1.bf16.xpose.msra.mxu0 0
        %290 = vmatprep.mubr.bf16.mxu0 0
        %291 = vmatmul.mubr.bf16.gmra.mrb[0].mxu0 %v253
        %v292 = vpop.f32.mrb[0].mxu0
        %v293 = vadd.f32 0.0, %v292
        %v294 = vpop.f32.mrb[0].mxu0
        %v295 = vpop.f32.mrb[0].mxu0
        %v296 = vpop.f32.mrb[0].mxu0
        %297 = vdwg.mxu0
        %v298 = vsel %vm251, %v293, -inf
        %299 = vmax.xlane.f32.xlu0 %v298
        %v300 = vpop.xlane.xlu0 %299
        %v301 = vmax.f32 %v239, %v300
        %v302 = vsub.f32 %v239, %v301
        %v303 = vmul.f32 %v302, 1.442695
        %v304 = vpow.pop %v303
        %v305 = vsub.f32 %v293, %v301
        %v306 = vmul.f32 %v305, 1.442695
        %v307 = vpow.pop %v306
        %v308 = vmul.f32 %v304, %v240
        %v309 = vsel %vm251, %v307, 0.0
        %310 = vadd.xlane.f32.xlu0 %v309
        %v311 = vpop.xlane.xlu0 %310
        %v312 = vadd.f32 %v308, %v311
        %v313 = vmul.f32 %v304, %v241
        %v314 = vpack.c.bf16 %v307, %v307
        %v316 = vsel %vm251, %v314, 0
        %vm318 = vcmask 1043456
        %v320 = vsel %vm318, %v250, 0
        %322 = vmatprep.subr.bf16.mxu0 0
        %323 = vmatpush1.bf16.msra.mxu0 %v320
        %324 = vmatprep.subr.bf16.mxu0 0
        %325 = vmatpush1.bf16.msra.mxu0 0
        %326 = vmatprep.subr.bf16.mxu0 0
        %327 = vmatpush1.bf16.msra.mxu0 0
        %328 = vmatprep.subr.bf16.mxu0 0
        %329 = vmatpush1.bf16.msra.mxu0 0
        %330 = vmatprep.subr.bf16.mxu0 0
        %331 = vmatpush1.bf16.msra.mxu0 0
        %332 = vmatprep.subr.bf16.mxu0 0
        %333 = vmatpush1.bf16.msra.mxu0 0
        %334 = vmatprep.subr.bf16.mxu0 0
        %335 = vmatpush1.bf16.msra.mxu0 0
        %336 = vmatprep.subr.bf16.mxu0 0
        %337 = vmatpush1.bf16.msra.mxu0 0
        %338 = vmatprep.subr.bf16.mxu0 0
        %339 = vmatpush1.bf16.msra.mxu0 0
        %340 = vmatprep.subr.bf16.mxu0 0
        %341 = vmatpush1.bf16.msra.mxu0 0
        %342 = vmatprep.subr.bf16.mxu0 0
        %343 = vmatpush1.bf16.msra.mxu0 0
        %344 = vmatprep.subr.bf16.mxu0 0
        %345 = vmatpush1.bf16.msra.mxu0 0
        %346 = vmatprep.subr.bf16.mxu0 0
        %347 = vmatpush1.bf16.msra.mxu0 0
        %348 = vmatprep.subr.bf16.mxu0 0
        %349 = vmatpush1.bf16.msra.mxu0 0
        %350 = vmatprep.subr.bf16.mxu0 0
        %351 = vmatpush1.bf16.msra.mxu0 0
        %352 = vmatprep.subr.bf16.mxu0 0
        %353 = vmatpush1.bf16.msra.mxu0 0
        %354 = vmatprep.mubr.bf16.mxu0 0
        %355 = vmatmul.mubr.bf16.gmra.mrb[0].mxu0 %v316
        %v356 = vpop.f32.mrb[0].mxu0
        %v357 = vadd.f32 0.0, %v356
        %v358 = vpop.f32.mrb[0].mxu0
        %v359 = vpop.f32.mrb[0].mxu0
        %v360 = vpop.f32.mrb[0].mxu0
        %361 = vdwg.mxu0
        %v362 = vadd.f32 %v313, %v357
      $region37: #{gpt_forward.8} parent=31 // loop_footer
        %s236 = sadd.s32 %s234, 1
      $region38: #{gpt_forward.8} parent=31 // loop_footer_branch
        %233 = sbr.rel target = $region34
      $region39: #{gpt_forward.8} parent=31 // loop_exit
        _
      %v363 = vlaneseq
      %v364 = vshrl.u32 %v363, 7
      %v365 = vlaneseq
      %v366 = vand.u32 %v365, 127
      %s367 = smul.u32 %s19, 8
      %vm368 = vcmp.ge.s32.totalorder %v364, %v366
      %s369 = sshra.s32 %s367, 3
      %s370 = sand.u32 %s367, 7
      %s371 = smul.addr %s369, 4
      %s372 = scalar_lea.vmem %s219, %s371
      %v373 = vld [vmem:[%s372] sm:$0xf]
      %s374 = smul.addr %s369, 4
      %s375 = scalar_lea.vmem %s223, %s374
      %v376 = vld [vmem:[%s375] sm:$0xf]
      %vm377 = vcmask 64512
      %v379 = vsel %vm377, %v232, 0
      %v382 = vsel %vm377, %v373, 0
      %384 = vmatprep.subr.bf16.mxu0 0
      %385 = vmatpush1.bf16.xpose.msra.mxu0 %v382
      %386 = vmatprep.subr.bf16.mxu0 0
      %387 = vmatpush1.bf16.xpose.msra.mxu0 0
      %388 = vmatprep.subr.bf16.mxu0 0
      %389 = vmatpush1.bf16.xpose.msra.mxu0 0
      %390 = vmatprep.subr.bf16.mxu0 0
      %391 = vmatpush1.bf16.xpose.msra.mxu0 0
      %392 = vmatprep.subr.bf16.mxu0 0
      %393 = vmatpush1.bf16.xpose.msra.mxu0 0
      %394 = vmatprep.subr.bf16.mxu0 0
      %395 = vmatpush1.bf16.xpose.msra.mxu0 0
      %396 = vmatprep.subr.bf16.mxu0 0
      %397 = vmatpush1.bf16.xpose.msra.mxu0 0
      %398 = vmatprep.subr.bf16.mxu0 0
      %399 = vmatpush1.bf16.xpose.msra.mxu0 0
      %400 = vmatprep.subr.bf16.mxu0 0
      %401 = vmatpush1.bf16.xpose.msra.mxu0 0
      %402 = vmatprep.subr.bf16.mxu0 0
      %403 = vmatpush1.bf16.xpose.msra.mxu0 0
      %404 = vmatprep.subr.bf16.mxu0 0
      %405 = vmatpush1.bf16.xpose.msra.mxu0 0
      %406 = vmatprep.subr.bf16.mxu0 0
      %407 = vmatpush1.bf16.xpose.msra.mxu0 0
      %408 = vmatprep.subr.bf16.mxu0 0
      %409 = vmatpush1.bf16.xpose.msra.mxu0 0
      %410 = vmatprep.subr.bf16.mxu0 0
      %411 = vmatpush1.bf16.xpose.msra.mxu0 0
      %412 = vmatprep.subr.bf16.mxu0 0
      %413 = vmatpush1.bf16.xpose.msra.mxu0 0
      %414 = vmatprep.subr.bf16.mxu0 0
      %415 = vmatpush1.bf16.xpose.msra.mxu0 0
      %416 = vmatprep.mubr.bf16.mxu0 0
      %417 = vmatmul.mubr.bf16.gmra.mrb[0].mxu0 %v379
      %v418 = vpop.f32.mrb[0].mxu0
      %v419 = vadd.f32 0.0, %v418
      %v420 = vpop.f32.mrb[0].mxu0
      %v421 = vpop.f32.mrb[0].mxu0
      %v422 = vpop.f32.mrb[0].mxu0
      %423 = vdwg.mxu0
      %v424 = vsel %vm368, %v419, -1e+30
      %v425 = vsel %vm377, %v424, -inf
      %426 = vmax.xlane.f32.xlu0 %v425
      %v427 = vpop.xlane.xlu0 %426
      %v428 = vmax.f32 %v239, %v427
      %v429 = vsub.f32 %v239, %v428
      %v430 = vmul.f32 %v429, 1.442695
      %v431 = vpow.pop %v430
      %v432 = vsub.f32 %v424, %v428
      %v433 = vmul.f32 %v432, 1.442695
      %v434 = vpow.pop %v433
      %v435 = vmul.f32 %v431, %v240
      %v436 = vsel %vm377, %v434, 0.0
      %437 = vadd.xlane.f32.xlu0 %v436
      %v438 = vpop.xlane.xlu0 %437
      %v439 = vadd.f32 %v435, %v438
      %v440 = vmul.f32 %v431, %v241
      %v441 = vpack.c.bf16 %v434, %v434
      %v443 = vsel %vm377, %v441, 0
      %vm445 = vcmask 1043456
      %v447 = vsel %vm445, %v376, 0
      %449 = vmatprep.subr.bf16.mxu0 0
      %450 = vmatpush1.bf16.msra.mxu0 %v447
      %451 = vmatprep.subr.bf16.mxu0 0
      %452 = vmatpush1.bf16.msra.mxu0 0
      %453 = vmatprep.subr.bf16.mxu0 0
      %454 = vmatpush1.bf16.msra.mxu0 0
      %455 = vmatprep.subr.bf16.mxu0 0
      %456 = vmatpush1.bf16.msra.mxu0 0
      %457 = vmatprep.subr.bf16.mxu0 0
      %458 = vmatpush1.bf16.msra.mxu0 0
      %459 = vmatprep.subr.bf16.mxu0 0
      %460 = vmatpush1.bf16.msra.mxu0 0
      %461 = vmatprep.subr.bf16.mxu0 0
      %462 = vmatpush1.bf16.msra.mxu0 0
      %463 = vmatprep.subr.bf16.mxu0 0
      %464 = vmatpush1.bf16.msra.mxu0 0
      %465 = vmatprep.subr.bf16.mxu0 0
      %466 = vmatpush1.bf16.msra.mxu0 0
      %467 = vmatprep.subr.bf16.mxu0 0
      %468 = vmatpush1.bf16.msra.mxu0 0
      %469 = vmatprep.subr.bf16.mxu0 0
      %470 = vmatpush1.bf16.msra.mxu0 0
      %471 = vmatprep.subr.bf16.mxu0 0
      %472 = vmatpush1.bf16.msra.mxu0 0
      %473 = vmatprep.subr.bf16.mxu0 0
      %474 = vmatpush1.bf16.msra.mxu0 0
      %475 = vmatprep.subr.bf16.mxu0 0
      %476 = vmatpush1.bf16.msra.mxu0 0
      %477 = vmatprep.subr.bf16.mxu0 0
      %478 = vmatpush1.bf16.msra.mxu0 0
      %479 = vmatprep.subr.bf16.mxu0 0
      %480 = vmatpush1.bf16.msra.mxu0 0
      %481 = vmatprep.mubr.bf16.mxu0 0
      %482 = vmatmul.mubr.bf16.gmra.mrb[0].mxu0 %v443
      %v483 = vpop.f32.mrb[0].mxu0
      %v484 = vadd.f32 0.0, %v483
      %v485 = vpop.f32.mrb[0].mxu0
      %v486 = vpop.f32.mrb[0].mxu0
      %v487 = vpop.f32.mrb[0].mxu0
      %488 = vdwg.mxu0
      %v489 = vadd.f32 %v440, %v484
      %v490 = vrcp.pop %v439
      %v491 = vmul.f32 %v489, %v490
      %v492 = vpack.c.bf16 %v491, %v491
      %vm493 = vcmask 60416
      %494 = vst.msk [vmem:[%s230] sm:$0xf] %vm493, %v492
      %p495 = scmp.lt.s32.totalorder %s18, 7
      %s496 = scalar_select %p495, %s18, 7
      %p497 = scmp.lt.s32.totalorder %s19, 0
      %s498 = scalar_select %p497, %s19, 0
      %s499 = sadd.s32 %s498, %s496
      %s500 = smul.addr %s499, 4
      %s501 = scalar_lea.vmem %s3, %s500
      // Predicated region
      $region40: #{gpt_forward.8} parent=31 // pred_check
        %p502 = pneg %p126
      $region41: #{gpt_forward.8} parent=31 // pred_check_branch
        %504 = sbr.rel (%p502) target = $region43
      $region42: #{gpt_forward.8} parent=31 // pred_region
        _
      $region43: #{gpt_forward.8} parent=31 // pred_fallthru
        _
    $region32: #{gpt_forward.8} parent=5 // pred_fallthru
      _
    %p505 = scmp.le.s32.totalorder 2, %s9
    // Predicated region
    $region44: #{gpt_forward.8} parent=5 // pred_check
      %p506 = pneg %p505
    $region45: #{gpt_forward.8} parent=5 // pred_check_branch
      %508 = sbr.rel (%p506) target = $region47
    $region46: #{gpt_forward.8} parent=5 // pred_region
      %s509 = ssub.s32 %s9, 2
      // Predicated region
      $region48: #{gpt_forward.8} parent=46 // pred_check
        %p510 = pneg %p132
      $region49: #{gpt_forward.8} parent=46 // pred_check_branch
        %512 = sbr.rel (%p510) target = $region51
      $region50: #{gpt_forward.8} parent=46 // pred_region
        %p513 = scmp.lt.s32.totalorder %s20, 7
        %s514 = scalar_select %p513, %s20, 7
        %p515 = scmp.lt.s32.totalorder %s21, 0
        %s516 = scalar_select %p515, %s21, 0
        %s517 = sadd.s32 %s516, %s514
        %s518 = smul.addr %s517, 4
        %s519 = scalar_lea.vmem %s3, %s518
      $region51: #{gpt_forward.8} parent=46 // pred_fallthru
        _
    $region47: #{gpt_forward.8} parent=5 // pred_fallthru
      _
  $region6: #{gpt_forward.8} parent=0 // loop_footer
    %s13 = sadd.s32 1, %s9
  $region7: #{gpt_forward.8} parent=0 // loop_footer_branch
    %8 = sbr.rel target = $region3
  $region8: #{gpt_forward.8} parent=0 // loop_exit
    _

// kernel: gpt_forward.13
$region0: #{gpt_forward.13}
  #allocation0 [shape = 'u32[]', space=smem, size = 0x4, offset = 0x4, fixed_abs, tag = 'smem constant byte address 0x4 - core index']
  #allocation1 [shape = 'u32[144,128]{1,0:T(1,128)}', space=vmem, size = 0x12000, scoped, tag = 'internal scratch']
  %s0 = inlined_call_operand.vmem [shape: f32[2,32], index: 0, kind: input, shape index: {}]
  %s1 = inlined_call_operand.vmem [shape: f32[1,32], index: 1, kind: input, shape index: {}]
  %s2 = inlined_call_operand.vmem [shape: f32[1,32], index: 2, kind: input, shape index: {}]
  %s3 = inlined_call_operand.vmem [shape: bf16[128,32], index: 3, kind: input, shape index: {}]
  %s4 = inlined_call_operand.hbm [shape: f32[2,128], index: 4, kind: output, shape index: {}]
  %s5 = sld [smem:[#allocation0]]
  $region26: #{gpt_forward.13} parent=0
    _
  %s7 = ssub.s32 1, %s5
  %s8 = scalar_select 0, %s7, %s5
  $region1: #{gpt_forward.13} parent=0
    #allocation2 [shape = 'u8[1024]{0}', space=vmem, size = 0x400, scoped, tag = 'output window, operand 0, single buffered']
    #allocation3 [shape = 's32[1]{0}', space=sflag, size = 0x4, scoped, tag = 'scoped memory for gpt_forward.13']
    %9 = vsyncpa [#allocation3], 0
    // Predicated region
    $region2: #{gpt_forward.13} parent=1 // pred_check
      _
    $region3: #{gpt_forward.13} parent=1 // pred_check_branch
      %11 = sbr.rel (0) target = $region5
    $region4: #{gpt_forward.13} parent=1 // pred_region
      _
    $region5: #{gpt_forward.13} parent=1 // pred_fallthru
      _
    // Predicated region
    $region6: #{gpt_forward.13} parent=1 // pred_check
      _
    $region7: #{gpt_forward.13} parent=1 // pred_check_branch
      %13 = sbr.rel (0) target = $region9
    $region8: #{gpt_forward.13} parent=1 // pred_region
      _
    $region9: #{gpt_forward.13} parent=1 // pred_fallthru
      _
    // Predicated region
    $region10: #{gpt_forward.13} parent=1 // pred_check
      _
    $region11: #{gpt_forward.13} parent=1 // pred_check_branch
      %15 = sbr.rel (0) target = $region13
    $region12: #{gpt_forward.13} parent=1 // pred_region
      _
    $region13: #{gpt_forward.13} parent=1 // pred_fallthru
      _
    // Predicated region
    $region14: #{gpt_forward.13} parent=1 // pred_check
      _
    $region15: #{gpt_forward.13} parent=1 // pred_check_branch
      %17 = sbr.rel (0) target = $region17
    $region16: #{gpt_forward.13} parent=1 // pred_region
      _
    $region17: #{gpt_forward.13} parent=1 // pred_fallthru
      _
    %v19 = vld [vmem:[%s0] sm:$0x3]
    %v20 = vld [vmem:[%s1] sm:$0x1]
    %v21 = vld [vmem:[%s2] sm:$0x1]
    %vm22 = vcmask 254976
    %v23 = vsel %vm22, %v19, 0.0
    %24 = vadd.xlane.f32.xlu0 %v23
    %v25 = vpop.xlane.xlu0 %24
    %v26 = vrcp.pop 32.0
    %v27 = vmul.f32 %v25, %v26
    %v28 = vsub.f32 %v19, %v27
    %v29 = vmul.f32 %v28, %v28
    %v30 = vsel %vm22, %v29, 0.0
    %31 = vadd.xlane.f32.xlu0 %v30
    %v32 = vpop.xlane.xlu0 %31
    %v33 = vmul.f32 %v32, %v26
    %v34 = vadd.f32 %v33, 1e-05
    %v35 = vrsqrt.pop %v34
    %v36 = vmul.f32 %v28, %v35
    %v38 = vlaneseq
    %v39 = vshrl.u32 %v38, 7
    %v40 = vsub.s32 0, %v39
    %v41 = vrot.slane %v20, %v40
    %v43 = vmul.f32 %v36, %v41
    %v45 = vlaneseq
    %v46 = vshrl.u32 %v45, 7
    %v47 = vsub.s32 0, %v46
    %v48 = vrot.slane %v21, %v47
    %v50 = vadd.f32 %v43, %v48
    %v51 = vpack.c.bf16 %v50, %v50
    %v52 = vld [vmem:[%s3] sm:$0xf]
    %v53 = vld [vmem:[%s3 + $0x4] sm:$0xf]
    %v54 = vld [vmem:[%s3 + $0x8] sm:$0xf]
    %v55 = vld [vmem:[%s3 + $0xc] sm:$0xf]
    %v56 = vld [vmem:[%s3 + $0x10] sm:$0xf]
    %v57 = vld [vmem:[%s3 + $0x14] sm:$0xf]
    %v58 = vld [vmem:[%s3 + $0x18] sm:$0xf]
    %v59 = vld [vmem:[%s3 + $0x1c] sm:$0xf]
    %v60 = vld [vmem:[%s3 + $0x20] sm:$0xf]
    %v61 = vld [vmem:[%s3 + $0x24] sm:$0xf]
    %v62 = vld [vmem:[%s3 + $0x28] sm:$0xf]
    %v63 = vld [vmem:[%s3 + $0x2c] sm:$0xf]
    %v64 = vld [vmem:[%s3 + $0x30] sm:$0xf]
    %v65 = vld [vmem:[%s3 + $0x34] sm:$0xf]
    %v66 = vld [vmem:[%s3 + $0x38] sm:$0xf]
    %v67 = vld [vmem:[%s3 + $0x3c] sm:$0xf]
    %v84 = vunpack.c.l.b16 %v52
    %v85 = vunpack.c.l.b16 %v53
    %v86 = vunpack.c.l.b16 %v54
    %v87 = vunpack.c.l.b16 %v55
    %v88 = vunpack.c.l.b16 %v56
    %v89 = vunpack.c.l.b16 %v57
    %v90 = vunpack.c.l.b16 %v58
    %v91 = vunpack.c.l.b16 %v59
    %v92 = vunpack.c.l.b16 %v60
    %v93 = vunpack.c.l.b16 %v61
    %v94 = vunpack.c.l.b16 %v62
    %v95 = vunpack.c.l.b16 %v63
    %v96 = vunpack.c.l.b16 %v64
    %v97 = vunpack.c.l.b16 %v65
    %v98 = vunpack.c.l.b16 %v66
    %v99 = vunpack.c.l.b16 %v67
    %v100 = vpack.c.b16 %v85, %v84
    %v101 = vpack.c.b16 %v87, %v86
    %v102 = vpack.c.b16 %v89, %v88
    %v103 = vpack.c.b16 %v91, %v90
    %v104 = vpack.c.b16 %v93, %v92
    %v105 = vpack.c.b16 %v95, %v94
    %v106 = vpack.c.b16 %v97, %v96
    %v107 = vpack.c.b16 %v99, %v98
    %vm108 = vcmask 261120
    %v110 = vsel %vm108, %v51, 0
    %v113 = vsel %vm108, %v100, 0
    %v116 = vsel %vm108, %v101, 0
    %v119 = vsel %vm108, %v102, 0
    %v122 = vsel %vm108, %v103, 0
    %v125 = vsel %vm108, %v104, 0
    %v128 = vsel %vm108, %v105, 0
    %v131 = vsel %vm108, %v106, 0
    %v134 = vsel %vm108, %v107, 0
    %136 = vmatprep.subr.bf16.mxu0 0
    %137 = vmatpush1.bf16.xpose.msra.mxu0 %v113
    %138 = vmatprep.subr.bf16.mxu0 0
    %139 = vmatpush1.bf16.xpose.msra.mxu0 %v116
    %140 = vmatprep.subr.bf16.mxu0 0
    %141 = vmatpush1.bf16.xpose.msra.mxu0 %v119
    %142 = vmatprep.subr.bf16.mxu0 0
    %143 = vmatpush1.bf16.xpose.msra.mxu0 %v122
    %144 = vmatprep.subr.bf16.mxu0 0
    %145 = vmatpush1.bf16.xpose.msra.mxu0 %v125
    %146 = vmatprep.subr.bf16.mxu0 0
    %147 = vmatpush1.bf16.xpose.msra.mxu0 %v128
    %148 = vmatprep.subr.bf16.mxu0 0
    %149 = vmatpush1.bf16.xpose.msra.mxu0 %v131
    %150 = vmatprep.subr.bf16.mxu0 0
    %151 = vmatpush1.bf16.xpose.msra.mxu0 %v134
    %152 = vmatprep.subr.bf16.mxu0 0
    %153 = vmatpush1.bf16.xpose.msra.mxu0 0
    %154 = vmatprep.subr.bf16.mxu0 0
    %155 = vmatpush1.bf16.xpose.msra.mxu0 0
    %156 = vmatprep.subr.bf16.mxu0 0
    %157 = vmatpush1.bf16.xpose.msra.mxu0 0
    %158 = vmatprep.subr.bf16.mxu0 0
    %159 = vmatpush1.bf16.xpose.msra.mxu0 0
    %160 = vmatprep.subr.bf16.mxu0 0
    %161 = vmatpush1.bf16.xpose.msra.mxu0 0
    %162 = vmatprep.subr.bf16.mxu0 0
    %163 = vmatpush1.bf16.xpose.msra.mxu0 0
    %164 = vmatprep.subr.bf16.mxu0 0
    %165 = vmatpush1.bf16.xpose.msra.mxu0 0
    %166 = vmatprep.subr.bf16.mxu0 0
    %167 = vmatpush1.bf16.xpose.msra.mxu0 0
    %168 = vmatprep.mubr.bf16.mxu0 0
    %169 = vmatmul.mubr.bf16.gmra.mrb[0].mxu0 %v110
    %v170 = vpop.f32.mrb[0].mxu0
    %v171 = vadd.f32 0.0, %v170
    %v172 = vpop.f32.mrb[0].mxu0
    %v173 = vpop.f32.mrb[0].mxu0
    %v174 = vpop.f32.mrb[0].mxu0
    %175 = vdwg.mxu0
    %176 = vst [vmem:[#allocation2] sm:$0x3] %v171
    // Predicated region
    $region18: #{gpt_forward.13} parent=1 // pred_check
      _
    $region19: #{gpt_forward.13} parent=1 // pred_check_branch
      %178 = sbr.rel (0) target = $region21
    $region20: #{gpt_forward.13} parent=1 // pred_region
      %s180 = ssub.s32 32, 32
      %181 = vsyncadd [#allocation3], %s180
      %s183 = sshll.u32 [#allocation2], 4
      %s184 = int_to_ptr.vmem [resolvable:$true] %s183
      %186 = dma.vmem_to_hbm [thread:$0]  %s184, 32, %s4, [#allocation3]
    $region21: #{gpt_forward.13} parent=1 // pred_fallthru
      _
    // Predicated region
    $region22: #{gpt_forward.13} parent=1 // pred_check
      _
    $region23: #{gpt_forward.13} parent=1 // pred_check_branch
      %188 = sbr.rel (0) target = $region25
    $region24: #{gpt_forward.13} parent=1 // pred_region
      %189 = dma.done [#allocation3], 32
    $region25: #{gpt_forward.13} parent=1 // pred_fallthru
      _
    %190 = vsyncpa [#allocation3], 1

// kernel: gpt_forward.9
$region0: #{gpt_forward.9}
  #allocation0 [shape = 'u32[]', space=smem, size = 0x4, offset = 0x4, fixed_abs, tag = 'smem constant byte address 0x4 - core index']
  #allocation1 [shape = 'u32[144,128]{1,0:T(1,128)}', space=vmem, size = 0x12000, scoped, tag = 'internal scratch']
  %s0 = inlined_call_operand.vmem [shape: bf16[16,32], index: 0, kind: input, shape index: {}]
  %s1 = inlined_call_operand.vmem [shape: f32[16,32], index: 1, kind: input, shape index: {}]
  %s2 = inlined_call_operand.vmem [shape: bf16[32,32], index: 2, kind: input, shape index: {}]
  %s3 = inlined_call_operand.vmem [shape: f32[1,32], index: 3, kind: input, shape index: {}]
  %s4 = inlined_call_operand.vmem [shape: f32[1,32], index: 4, kind: input, shape index: {}]
  %s5 = inlined_call_operand.vmem [shape: f32[1,32], index: 5, kind: input, shape index: {}]
  %s6 = inlined_call_operand.vmem [shape: bf16[32,128], index: 6, kind: input, shape index: {}]
  %s7 = inlined_call_operand.vmem [shape: f32[1,128], index: 7, kind: input, shape index: {}]
  %s8 = inlined_call_operand.vmem [shape: bf16[128,32], index: 8, kind: input, shape index: {}]
  %s9 = inlined_call_operand.vmem [shape: f32[1,32], index: 9, kind: input, shape index: {}]
  %s10 = inlined_call_operand.vmem [shape: f32[16,32], index: 10, kind: output, shape index: {}]
  %s11 = sld [smem:[#allocation0]]
  $region50: #{gpt_forward.9} parent=0
    _
  %s13 = ssub.s32 1, %s11
  %s14 = scalar_select 0, %s13, %s11
  // Predicated region
  $region2: #{gpt_forward.9} parent=0 // pred_check
    _
  $region3: #{gpt_forward.9} parent=0 // pred_check_branch
    %16 = sbr.rel (0) target = $region5
  $region4: #{gpt_forward.9} parent=0 // pred_region
    _
  $region5: #{gpt_forward.9} parent=0 // pred_fallthru
    _
  // Predicated region
  $region6: #{gpt_forward.9} parent=0 // pred_check
    _
  $region7: #{gpt_forward.9} parent=0 // pred_check_branch
    %18 = sbr.rel (0) target = $region9
  $region8: #{gpt_forward.9} parent=0 // pred_region
    _
  $region9: #{gpt_forward.9} parent=0 // pred_fallthru
    _
  // Predicated region
  $region10: #{gpt_forward.9} parent=0 // pred_check
    _
  $region11: #{gpt_forward.9} parent=0 // pred_check_branch
    %20 = sbr.rel (0) target = $region13
  $region12: #{gpt_forward.9} parent=0 // pred_region
    _
  $region13: #{gpt_forward.9} parent=0 // pred_fallthru
    _
  // Predicated region
  $region14: #{gpt_forward.9} parent=0 // pred_check
    _
  $region15: #{gpt_forward.9} parent=0 // pred_check_branch
    %22 = sbr.rel (0) target = $region17
  $region16: #{gpt_forward.9} parent=0 // pred_region
    _
  $region17: #{gpt_forward.9} parent=0 // pred_fallthru
    _
  // Predicated region
  $region18: #{gpt_forward.9} parent=0 // pred_check
    _
  $region19: #{gpt_forward.9} parent=0 // pred_check_branch
    %24 = sbr.rel (0) target = $region21
  $region20: #{gpt_forward.9} parent=0 // pred_region
    _
  $region21: #{gpt_forward.9} parent=0 // pred_fallthru
    _
  // Predicated region
  $region22: #{gpt_forward.9} parent=0 // pred_check
    _
  $region23: #{gpt_forward.9} parent=0 // pred_check_branch
    %26 = sbr.rel (0) target = $region25
  $region24: #{gpt_forward.9} parent=0 // pred_region
    _
  $region25: #{gpt_forward.9} parent=0 // pred_fallthru
    _
  // Predicated region
  $region26: #{gpt_forward.9} parent=0 // pred_check
    _
  $region27: #{gpt_forward.9} parent=0 // pred_check_branch
    %28 = sbr.rel (0) target = $region29
  $region28: #{gpt_forward.9} parent=0 // pred_region
    _
  $region29: #{gpt_forward.9} parent=0 // pred_fallthru
    _
  // Predicated region
  $region30: #{gpt_forward.9} parent=0 // pred_check
    _
  $region31: #{gpt_forward.9} parent=0 // pred_check_branch
    %30 = sbr.rel (0) target = $region33
  $region32: #{gpt_forward.9} parent=0 // pred_region
    _
  $region33: #{gpt_forward.9} parent=0 // pred_fallthru
    _
  // Predicated region
  $region34: #{gpt_forward.9} parent=0 // pred_check
    _
  $region35: #{gpt_forward.9} parent=0 // pred_check_branch
    %32 = sbr.rel (0) target = $region37
  $region36: #{gpt_forward.9} parent=0 // pred_region
    _
  $region37: #{gpt_forward.9} parent=0 // pred_fallthru
    _
  // Predicated region
  $region38: #{gpt_forward.9} parent=0 // pred_check
    _
  $region39: #{gpt_forward.9} parent=0 // pred_check_branch
    %34 = sbr.rel (0) target = $region41
  $region40: #{gpt_forward.9} parent=0 // pred_region
    _
  $region41: #{gpt_forward.9} parent=0 // pred_fallthru
    _
  %v36 = vld [vmem:[%s1] sm:$0xff]
  %v37 = vld [vmem:[%s1 + $0x8] sm:$0xff]
  %v38 = vld [vmem:[%s0] sm:$0xf]
  %v39 = vld [vmem:[%s0 + $0x4] sm:$0xf]
  %v40 = vld [vmem:[%s2] sm:$0xf]
  %v41 = vld [vmem:[%s2 + $0x4] sm:$0xf]
  %v42 = vld [vmem:[%s2 + $0x8] sm:$0xf]
  %v43 = vld [vmem:[%s2 + $0xc] sm:$0xf]
  %v44 = vld [vmem:[%s3] sm:$0x1]
  %v46 = vlaneseq
  %v47 = vshrl.u32 %v46, 7
  %v48 = vsub.s32 0, %v47
  %v49 = vrot.slane %v44, %v48
  %v53 = vunpack.c.l.b16 %v38
  %v54 = vunpack.c.l.b16 %v39
  %v55 = vpack.c.b16 %v54, %v53
  %v60 = vunpack.c.l.b16 %v40
  %v61 = vunpack.c.l.b16 %v41
  %v62 = vunpack.c.l.b16 %v42
  %v63 = vunpack.c.l.b16 %v43
  %v64 = vpack.c.b16 %v61, %v60
  %v65 = vpack.c.b16 %v63, %v62
  %vm68 = vcmask 261120
  %v70 = vsel %vm68, %v55, 0
  %72 = vmatprep.subr.bf16.mxu0 0
  %73 = vmatpush1.bf16.msra.mxu0 %v64
  %74 = vmatprep.subr.bf16.mxu0 0
  %75 = vmatpush1.bf16.msra.mxu0 %v65
  %76 = vmatprep.subr.bf16.mxu0 0
  %77 = vmatpush1.bf16.msra.mxu0 0
  %78 = vmatprep.subr.bf16.mxu0 0
  %79 = vmatpush1.bf16.msra.mxu0 0
  %80 = vmatprep.subr.bf16.mxu0 0
  %81 = vmatpush1.bf16.msra.mxu0 0
  %82 = vmatprep.subr.bf16.mxu0 0
  %83 = vmatpush1.bf16.msra.mxu0 0
  %84 = vmatprep.subr.bf16.mxu0 0
  %85 = vmatpush1.bf16.msra.mxu0 0
  %86 = vmatprep.subr.bf16.mxu0 0
  %87 = vmatpush1.bf16.msra.mxu0 0
  %88 = vmatprep.subr.bf16.mxu0 0
  %89 = vmatpush1.bf16.msra.mxu0 0
  %90 = vmatprep.subr.bf16.mxu0 0
  %91 = vmatpush1.bf16.msra.mxu0 0
  %92 = vmatprep.subr.bf16.mxu0 0
  %93 = vmatpush1.bf16.msra.mxu0 0
  %94 = vmatprep.subr.bf16.mxu0 0
  %95 = vmatpush1.bf16.msra.mxu0 0
  %96 = vmatprep.subr.bf16.mxu0 0
  %97 = vmatpush1.bf16.msra.mxu0 0
  %98 = vmatprep.subr.bf16.mxu0 0
  %99 = vmatpush1.bf16.msra.mxu0 0
  %100 = vmatprep.subr.bf16.mxu0 0
  %101 = vmatpush1.bf16.msra.mxu0 0
  %102 = vmatprep.subr.bf16.mxu0 0
  %103 = vmatpush1.bf16.msra.mxu0 0
  %104 = vmatprep.mubr.bf16.mxu0 0
  %105 = vmatmul.mubr.bf16.gmra.mrb[0].mxu0 %v70
  %v106 = vpop.f32.mrb[0].mxu0
  %v107 = vadd.f32 %v49, %v106
  %v108 = vpop.f32.mrb[0].mxu0
  %v109 = vpop.f32.mrb[0].mxu0
  %v110 = vadd.f32 %v49, %v109
  %v111 = vpop.f32.mrb[0].mxu0
  %112 = vdwg.mxu0
  %v113 = vadd.f32 %v36, %v107
  %v114 = vadd.f32 %v37, %v110
  %v115 = vld [vmem:[%s4] sm:$0x1]
  %v116 = vld [vmem:[%s5] sm:$0x1]
  %v117 = vsel %vm68, %v113, 0.0
  %118 = vadd.xlane.f32.xlu0 %v117
  %v119 = vpop.xlane.xlu0 %118
  %v120 = vsel %vm68, %v114, 0.0
  %121 = vadd.xlane.f32.xlu0 %v120
  %v122 = vpop.xlane.xlu0 %121
  %v123 = vrcp.pop 32.0
  %v124 = vmul.f32 %v119, %v123
  %v125 = vmul.f32 %v122, %v123
  %v126 = vsub.f32 %v113, %v124
  %v127 = vsub.f32 %v114, %v125
  %v128 = vmul.f32 %v126, %v126
  %v129 = vmul.f32 %v127, %v127
  %v130 = vsel %vm68, %v128, 0.0
  %131 = vadd.xlane.f32.xlu0 %v130
  %v132 = vpop.xlane.xlu0 %131
  %v133 = vsel %vm68, %v129, 0.0
  %134 = vadd.xlane.f32.xlu0 %v133
  %v135 = vpop.xlane.xlu0 %134
  %v136 = vmul.f32 %v132, %v123
  %v137 = vmul.f32 %v135, %v123
  %v138 = vadd.f32 %v136, 1e-05
  %v139 = vadd.f32 %v137, 1e-05
  %v140 = vrsqrt.pop %v138
  %v141 = vrsqrt.pop %v139
  %v142 = vmul.f32 %v126, %v140
  %v143 = vmul.f32 %v127, %v141
  %v145 = vlaneseq
  %v146 = vshrl.u32 %v145, 7
  %v147 = vsub.s32 0, %v146
  %v148 = vrot.slane %v115, %v147
  %v150 = vmul.f32 %v142, %v148
  %v151 = vmul.f32 %v143, %v148
  %v153 = vlaneseq
  %v154 = vshrl.u32 %v153, 7
  %v155 = vsub.s32 0, %v154
  %v156 = vrot.slane %v116, %v155
  %v158 = vadd.f32 %v150, %v156
  %v159 = vadd.f32 %v151, %v156
  %v160 = vpack.c.bf16 %v159, %v158
  %v161 = vld [vmem:[%s6] sm:$0xf]
  %v162 = vld [vmem:[%s6 + $0x4] sm:$0xf]
  %v163 = vld [vmem:[%s6 + $0x8] sm:$0xf]
  %v164 = vld [vmem:[%s6 + $0xc] sm:$0xf]
  %v165 = vld [vmem:[%s7] sm:$0x1]
  %v167 = vlaneseq
  %v168 = vshrl.u32 %v167, 7
  %v169 = vsub.s32 0, %v168
  %v170 = vrot.slane %v165, %v169
  %v176 = vunpack.c.l.b16 %v161
  %v177 = vunpack.c.l.b16 %v162
  %v178 = vunpack.c.l.b16 %v163
  %v179 = vunpack.c.l.b16 %v164
  %v180 = vpack.c.b16 %v177, %v176
  %v181 = vpack.c.b16 %v179, %v178
  %v185 = vsel %vm68, %v160, 0
  %187 = vmatprep.subr.bf16.mxu0 0
  %188 = vmatpush1.bf16.msra.mxu0 %v180
  %189 = vmatprep.subr.bf16.mxu0 0
  %190 = vmatpush1.bf16.msra.mxu0 %v181
  %191 = vmatprep.subr.bf16.mxu0 0
  %192 = vmatpush1.bf16.msra.mxu0 0
  %193 = vmatprep.subr.bf16.mxu0 0
  %194 = vmatpush1.bf16.msra.mxu0 0
  %195 = vmatprep.subr.bf16.mxu0 0
  %196 = vmatpush1.bf16.msra.mxu0 0
  %197 = vmatprep.subr.bf16.mxu0 0
  %198 = vmatpush1.bf16.msra.mxu0 0
  %199 = vmatprep.subr.bf16.mxu0 0
  %200 = vmatpush1.bf16.msra.mxu0 0
  %201 = vmatprep.subr.bf16.mxu0 0
  %202 = vmatpush1.bf16.msra.mxu0 0
  %203 = vmatprep.subr.bf16.mxu0 0
  %204 = vmatpush1.bf16.msra.mxu0 0
  %205 = vmatprep.subr.bf16.mxu0 0
  %206 = vmatpush1.bf16.msra.mxu0 0
  %207 = vmatprep.subr.bf16.mxu0 0
  %208 = vmatpush1.bf16.msra.mxu0 0
  %209 = vmatprep.subr.bf16.mxu0 0
  %210 = vmatpush1.bf16.msra.mxu0 0
  %211 = vmatprep.subr.bf16.mxu0 0
  %212 = vmatpush1.bf16.msra.mxu0 0
  %213 = vmatprep.subr.bf16.mxu0 0
  %214 = vmatpush1.bf16.msra.mxu0 0
  %215 = vmatprep.subr.bf16.mxu0 0
  %216 = vmatpush1.bf16.msra.mxu0 0
  %217 = vmatprep.subr.bf16.mxu0 0
  %218 = vmatpush1.bf16.msra.mxu0 0
  %219 = vmatprep.mubr.bf16.mxu0 0
  %220 = vmatmul.mubr.bf16.gmra.mrb[0].mxu0 %v185
  %v221 = vpop.f32.mrb[0].mxu0
  %v222 = vadd.f32 %v170, %v221
  %v223 = vpop.f32.mrb[0].mxu0
  %v224 = vpop.f32.mrb[0].mxu0
  %v225 = vadd.f32 %v170, %v224
  %v226 = vpop.f32.mrb[0].mxu0
  %227 = vdwg.mxu0
  %v228 = vmul.f32 %v222, 0.5
  %v229 = vmul.f32 %v225, 0.5
  %v230 = vmul.f32 %v222, 0.70710677
  %v231 = vmul.f32 %v225, 0.70710677
  %vm232 = vcmp.ge.f32.partialorder %v230, 0.0
  %vm233 = vcmp.ge.f32.partialorder %v231, 0.0
  %v234 = vsel %vm232, 1.0, -1.0
  %v235 = vsel %vm233, 1.0, -1.0
  %v236 = vand.u32 2147483647, %v230
  %v237 = vand.u32 2147483647, %v231
  %v238 = vmul.f32 %v236, 0.3275911
  %v239 = vmul.f32 %v237, 0.3275911
  %v240 = vadd.f32 %v238, 1.0
  %v241 = vadd.f32 %v239, 1.0
  %v242 = vrcp.pop %v240
  %v243 = vmul.f32 1.0, %v242
  %v244 = vrcp.pop %v241
  %v245 = vmul.f32 1.0, %v244
  %v246 = vmul.f32 %v243, 1.0614054
  %v247 = vmul.f32 %v245, 1.0614054
  %v248 = vadd.f32 %v246, -1.4531521
  %v249 = vadd.f32 %v247, -1.4531521
  %v250 = vmul.f32 %v248, %v243
  %v251 = vmul.f32 %v249, %v245
  %v252 = vadd.f32 %v250, 1.4214138
  %v253 = vadd.f32 %v251, 1.4214138
  %v254 = vmul.f32 %v252, %v243
  %v255 = vmul.f32 %v253, %v245
  %v256 = vadd.f32 %v254, -0.28449672
  %v257 = vadd.f32 %v255, -0.28449672
  %v258 = vmul.f32 %v256, %v243
  %v259 = vmul.f32 %v257, %v245
  %v260 = vadd.f32 %v258, 0.2548296
  %v261 = vadd.f32 %v259, 0.2548296
  %v262 = vmul.f32 %v260, %v243
  %v263 = vmul.f32 %v261, %v245
  %v264 = vsub.f32 0.0, %v236
  %v265 = vsub.f32 0.0, %v237
  %v266 = vmul.f32 %v264, %v236
  %v267 = vmul.f32 %v265, %v237
  %v268 = vmul.f32 %v266, 1.442695
  %v269 = vpow.pop %v268
  %v270 = vmul.f32 %v267, 1.442695
  %v271 = vpow.pop %v270
  %v272 = vmul.f32 %v262, %v269
  %v273 = vmul.f32 %v263, %v271
  %v274 = vsub.f32 1.0, %v272
  %v275 = vsub.f32 1.0, %v273
  %v276 = vmul.f32 %v234, %v274
  %v277 = vmul.f32 %v235, %v275
  %v278 = vadd.f32 %v276, 1.0
  %v279 = vadd.f32 %v277, 1.0
  %v280 = vmul.f32 %v228, %v278
  %v281 = vmul.f32 %v229, %v279
  %v282 = vpack.c.bf16 %v281, %v280
  %v283 = vld [vmem:[%s8] sm:$0xf]
  %v284 = vld [vmem:[%s8 + $0x4] sm:$0xf]
  %v285 = vld [vmem:[%s8 + $0x8] sm:$0xf]
  %v286 = vld [vmem:[%s8 + $0xc] sm:$0xf]
  %v287 = vld [vmem:[%s8 + $0x10] sm:$0xf]
  %v288 = vld [vmem:[%s8 + $0x14] sm:$0xf]
  %v289 = vld [vmem:[%s8 + $0x18] sm:$0xf]
  %v290 = vld [vmem:[%s8 + $0x1c] sm:$0xf]
  %v291 = vld [vmem:[%s8 + $0x20] sm:$0xf]
  %v292 = vld [vmem:[%s8 + $0x24] sm:$0xf]
  %v293 = vld [vmem:[%s8 + $0x28] sm:$0xf]
  %v294 = vld [vmem:[%s8 + $0x2c] sm:$0xf]
  %v295 = vld [vmem:[%s8 + $0x30] sm:$0xf]
  %v296 = vld [vmem:[%s8 + $0x34] sm:$0xf]
  %v297 = vld [vmem:[%s8 + $0x38] sm:$0xf]
  %v298 = vld [vmem:[%s8 + $0x3c] sm:$0xf]
  %v299 = vld [vmem:[%s9] sm:$0x1]
  %v301 = vlaneseq
  %v302 = vshrl.u32 %v301, 7
  %v303 = vsub.s32 0, %v302
  %v304 = vrot.slane %v299, %v303
  %v322 = vunpack.c.l.b16 %v283
  %v323 = vunpack.c.l.b16 %v284
  %v324 = vunpack.c.l.b16 %v285
  %v325 = vunpack.c.l.b16 %v286
  %v326 = vunpack.c.l.b16 %v287
  %v327 = vunpack.c.l.b16 %v288
  %v328 = vunpack.c.l.b16 %v289
  %v329 = vunpack.c.l.b16 %v290
  %v330 = vunpack.c.l.b16 %v291
  %v331 = vunpack.c.l.b16 %v292
  %v332 = vunpack.c.l.b16 %v293
  %v333 = vunpack.c.l.b16 %v294
  %v334 = vunpack.c.l.b16 %v295
  %v335 = vunpack.c.l.b16 %v296
  %v336 = vunpack.c.l.b16 %v297
  %v337 = vunpack.c.l.b16 %v298
  %v338 = vpack.c.b16 %v323, %v322
  %v339 = vpack.c.b16 %v325, %v324
  %v340 = vpack.c.b16 %v327, %v326
  %v341 = vpack.c.b16 %v329, %v328
  %v342 = vpack.c.b16 %v331, %v330
  %v343 = vpack.c.b16 %v333, %v332
  %v344 = vpack.c.b16 %v335, %v334
  %v345 = vpack.c.b16 %v337, %v336
  %354 = vmatprep.subr.bf16.mxu0 0
  %355 = vmatpush1.bf16.msra.mxu0 %v338
  %356 = vmatprep.subr.bf16.mxu0 0
  %357 = vmatpush1.bf16.msra.mxu0 %v339
  %358 = vmatprep.subr.bf16.mxu0 0
  %359 = vmatpush1.bf16.msra.mxu0 %v340
  %360 = vmatprep.subr.bf16.mxu0 0
  %361 = vmatpush1.bf16.msra.mxu0 %v341
  %362 = vmatprep.subr.bf16.mxu0 0
  %363 = vmatpush1.bf16.msra.mxu0 %v342
  %364 = vmatprep.subr.bf16.mxu0 0
  %365 = vmatpush1.bf16.msra.mxu0 %v343
  %366 = vmatprep.subr.bf16.mxu0 0
  %367 = vmatpush1.bf16.msra.mxu0 %v344
  %368 = vmatprep.subr.bf16.mxu0 0
  %369 = vmatpush1.bf16.msra.mxu0 %v345
  %370 = vmatprep.subr.bf16.mxu0 0
  %371 = vmatpush1.bf16.msra.mxu0 0
  %372 = vmatprep.subr.bf16.mxu0 0
  %373 = vmatpush1.bf16.msra.mxu0 0
  %374 = vmatprep.subr.bf16.mxu0 0
  %375 = vmatpush1.bf16.msra.mxu0 0
  %376 = vmatprep.subr.bf16.mxu0 0
  %377 = vmatpush1.bf16.msra.mxu0 0
  %378 = vmatprep.subr.bf16.mxu0 0
  %379 = vmatpush1.bf16.msra.mxu0 0
  %380 = vmatprep.subr.bf16.mxu0 0
  %381 = vmatpush1.bf16.msra.mxu0 0
  %382 = vmatprep.subr.bf16.mxu0 0
  %383 = vmatpush1.bf16.msra.mxu0 0
  %384 = vmatprep.subr.bf16.mxu0 0
  %385 = vmatpush1.bf16.msra.mxu0 0
  %386 = vmatprep.mubr.bf16.mxu0 0
  %387 = vmatmul.mubr.bf16.gmra.mrb[0].mxu0 %v282
  %v388 = vpop.f32.mrb[0].mxu0
  %v389 = vadd.f32 %v304, %v388
  %v390 = vpop.f32.mrb[0].mxu0
  %v391 = vpop.f32.mrb[0].mxu0
  %v392 = vadd.f32 %v304, %v391
  %v393 = vpop.f32.mrb[0].mxu0
  %394 = vdwg.mxu0
  %v395 = vadd.f32 %v113, %v389
  %v396 = vadd.f32 %v114, %v392
  %397 = vst.msk [vmem:[%s10] sm:$0xff] %vm68, %v395
  %398 = vst.msk [vmem:[%s10 + $0x8] sm:$0xff] %vm68, %v396
  // Predicated region
  $region42: #{gpt_forward.9} parent=0 // pred_check
    _
  $region43: #{gpt_forward.9} parent=0 // pred_check_branch
    %400 = sbr.rel (0) target = $region45
  $region44: #{gpt_forward.9} parent=0 // pred_region
    _
  $region45: #{gpt_forward.9} parent=0 // pred_fallthru
    _
  // Predicated region
  $region46: #{gpt_forward.9} parent=0 // pred_check
    _
  $region47: #{gpt_forward.9} parent=0 // pred_check_branch
    %402 = sbr.rel (0) target = $region49
  $region48: #{gpt_forward.9} parent=0 // pred_region
    _
  $region49: #{gpt_forward.9} parent=0 // pred_fallthru
    _

</llo_original>
